<compile_context>
chip_gen: v7x
topology: tpu7x:2x2x1
jax: 0.10.0
libtpu: 0.0.40
codegen_flags: <defaults>
</compile_context>

<pallas_src>
import functools

import numpy as np

import jax
import jax.numpy as jnp
from jax.experimental import pallas as pl
from jax.experimental.pallas import tpu as pltpu

try:  # exact Hungarian matching when scipy is available
    from scipy.optimize import linear_sum_assignment as _linear_sum_assignment
except Exception:  # pragma: no cover
    _linear_sum_assignment = None


# ----------------------------------------------------------------------------
# Pallas kernel: per-(batch, point-tile) step of the matcher cost matrices
# ----------------------------------------------------------------------------
def matcher_cost_kernel(logits_ref, onehot_ref, tgt_ref, outT_ref, out_ref,
                        acc_ce_ref, acc_dn_ref, sps_ref, sig_ref, tgs_ref,
                        *, w_class, w_mask, w_dice, num_points, fuse):
    """Refs:
      logits_ref : (1, Q, NC) f32   class logits (block resident across p)
      onehot_ref : (1, M, NC) f32   target-label one-hots (resident across p)
      tgt_ref    : (1, M, TP) bf16  target masks sampled at this point tile
      outT_ref   : (1, TP, Q) bf16  predicted mask logits at points, transposed
      out_ref    : (1, 2, M, Q) f32 stacked [C^T, IoU^T]
      acc_ce_ref : (M, Q)  f32      sum_p tgt * (-out)            (CE cross term)
      acc_dn_ref : (M, Q)  f32      sum_p tgt * sigmoid(out)      (dice numerator / 2)
      sps_ref    : (1, Q)  f32      sum_p softplus(out)
      sig_ref    : (1, Q)  f32      sum_p sigmoid(out)
      tgs_ref    : (M, 1)  f32      sum_p tgt
    """
    p = pl.program_id(1)
    last_p = pl.num_programs(1) - 1

    @pl.when(p == 0)
    def _init():
        acc_ce_ref[...] = jnp.zeros_like(acc_ce_ref)
        acc_dn_ref[...] = jnp.zeros_like(acc_dn_ref)
        sps_ref[...] = jnp.zeros_like(sps_ref)
        sig_ref[...] = jnp.zeros_like(sig_ref)
        tgs_ref[...] = jnp.zeros_like(tgs_ref)

    out_bf = outT_ref[0]                          # (TP, Q) bf16
    tgt_bf = tgt_ref[0]                           # (M, TP) bf16
    out_f = out_bf.astype(jnp.float32)            # elementwise math in f32
    q = out_bf.shape[1]

    sig = jax.nn.sigmoid(out_f)                                        # (TP, Q)
    # numerically stable softplus (EUP exp + log1p)
    sps = jnp.maximum(out_f, 0.0) + jnp.log1p(jnp.exp(-jnp.abs(out_f)))

    sps_ref[...] += jnp.sum(sps, axis=0, keepdims=True)                # (1, Q)
    sig_ref[...] += jnp.sum(sig, axis=0, keepdims=True)                # (1, Q)
    tgs_ref[...] += jnp.sum(tgt_bf.astype(jnp.float32), axis=1,
                            keepdims=True)                             # (M, 1)

    neg_bf = -out_bf                              # exact in bf16
    sig_bf = sig.astype(jnp.bfloat16)
    if fuse:
        # single MXU call: tgt(M,TP) @ [ -out | sigmoid(out) ](TP, 2Q)
        rhs = jnp.concatenate([neg_bf, sig_bf], axis=1)                # (TP, 2Q)
        both = jnp.dot(tgt_bf, rhs, preferred_element_type=jnp.float32)
        acc_ce_ref[...] += both[:, :q]
        acc_dn_ref[...] += both[:, q:]
    else:
        acc_ce_ref[...] += jnp.dot(tgt_bf, neg_bf,
                                   preferred_element_type=jnp.float32)
        acc_dn_ref[...] += jnp.dot(tgt_bf, sig_bf,
                                   preferred_element_type=jnp.float32)

    @pl.when(p == last_p)
    def _finalize():
        inv_p = 1.0 / num_points
        # batch_sigmoid_ce_loss^T:
        #   (sum_p tgt*softplus(-x) + (1-tgt)*softplus(x)) / P
        # = (sum_p tgt*(-x) + sum_p softplus(x)) / P   since softplus(-x)=softplus(x)-x
        cost_mask = (acc_ce_ref[...] + sps_ref[...]) * inv_p           # (M, Q)

        # batch_dice_loss^T
        denom = sig_ref[...] + tgs_ref[...]                            # (M, Q)
        cost_dice = 1.0 - (2.0 * acc_dn_ref[...] + 1.0) / (denom + 1.0)
        iou = 1.0 - cost_dice

        # class cost^T: -softmax(logits)[q, labels[m]]  (gather as one-hot matmul)
        logits = logits_ref[0].astype(jnp.float32)                     # (Q, NC)
        onehot = onehot_ref[0].astype(jnp.float32)                     # (M, NC)
        z = logits - jnp.max(logits, axis=-1, keepdims=True)
        e = jnp.exp(z)
        prob = e * pl.reciprocal(jnp.sum(e, axis=-1, keepdims=True), approx=True)
        cost_class = -jnp.einsum('mc,qc->mq', onehot, prob,
                                 preferred_element_type=jnp.float32)   # (M, Q)

        out_ref[0, 0] = (w_mask * cost_mask + w_class * cost_class
                         + w_dice * cost_dice)
        out_ref[0, 1] = iou


def _choose_point_tile(P, Q, M, budget_bytes=8 * 2 ** 20):
    """Largest multiple-of-128 divisor of P whose double-buffered bf16 point
    blocks ((TP, Q) + (M, TP)) stay under `budget_bytes` (sized for v7x/v5e)."""
    if P % 128 != 0:
        # TODO(synk): ragged last point tiles are not supported; fall back to a
        # single full-extent block (legal for any P).
        return P
    per_point = 2 * 2 * (Q + M)          # bf16 bytes, x2 for double buffering
    cap = max(128, budget_bytes // max(per_point, 1))
    best = 128
    t = 128
    while t <= P:
        if P % t == 0 and t <= cap:
            best = t
        t += 128
    return best


def compute_cost_matrices(logits, onehot, tgt_pts, out_pts_t,
                          w_class, w_mask, w_dice, point_tile=None):
    """logits (B,Q,NC) f32, onehot (B,M,NC) f32, tgt_pts (B,M,P) bf16,
    out_pts_t (B,P,Q) bf16  ->  (B, 2, M, Q) f32 stacked [C^T, IoU^T]."""
    B, Q, NC = logits.shape
    M = onehot.shape[1]
    P = out_pts_t.shape[1]

    tp = point_tile if point_tile is not None else _choose_point_tile(P, Q, M)
    if P % tp != 0 or (tp != P and tp % 128 != 0):
        tp = P
    n_pt = P // tp
    fuse = (Q % 128 == 0)   # lane-aligned -> single fused MXU contraction

    kernel = functools.partial(
        matcher_cost_kernel,
        w_class=float(w_class), w_mask=float(w_mask), w_dice=float(w_dice),
        num_points=float(P), fuse=fuse)

    grid_spec = pltpu.PrefetchScalarGridSpec(
        num_scalar_prefetch=0,
        grid=(B, n_pt),
        in_specs=[
            pl.BlockSpec((1, Q, NC), lambda b, p: (b, 0, 0)),   # logits
            pl.BlockSpec((1, M, NC), lambda b, p: (b, 0, 0)),   # one-hot labels
            pl.BlockSpec((1, M, tp), lambda b, p: (b, 0, p)),   # tgt masks @ pts
            pl.BlockSpec((1, tp, Q), lambda b, p: (b, p, 0)),   # out logits @ pts^T
        ],
        out_specs=pl.BlockSpec((1, 2, M, Q), lambda b, p: (b, 0, 0, 0)),
        scratch_shapes=[
            pltpu.VMEM((M, Q), jnp.float32),   # CE cross-term accumulator
            pltpu.VMEM((M, Q), jnp.float32),   # dice numerator accumulator
            pltpu.VMEM((1, Q), jnp.float32),   # sum_p softplus(out)
            pltpu.VMEM((1, Q), jnp.float32),   # sum_p sigmoid(out)
            pltpu.VMEM((M, 1), jnp.float32),   # sum_p tgt
        ],
    )

    # VMEM budgeting: double-buffered inputs + outputs + scratch, with headroom.
    est = (2 * (Q * NC * 4 + M * NC * 4 + M * tp * 2 + tp * Q * 2)
           + 2 * (2 * M * Q * 4)
           + (2 * M * Q + 2 * Q + M) * 4)
    vmem_limit = int(min(60 * 2 ** 20, max(16 * 2 ** 20, 4 * est)))

    return pl.pallas_call(
        kernel,
        out_shape=jax.ShapeDtypeStruct((B, 2, M, Q), jnp.float32),
        grid_spec=grid_spec,
        compiler_params=pltpu.CompilerParams(
            dimension_semantics=("parallel", "arbitrary"),
            vmem_limit_bytes=vmem_limit),
    )(logits, onehot, tgt_pts, out_pts_t)


# ----------------------------------------------------------------------------
# Host/XLA glue: point_sample (bilinear, align_corners=False, zero padding)
# ----------------------------------------------------------------------------
def point_sample_bilinear(masks, coords):
    """masks: (N, H, W) float32, coords: (P, 2) in [0, 1), (x, y) order."""
    N, H, W = masks.shape
    x = coords[:, 0] * W - 0.5
    y = coords[:, 1] * H - 0.5
    x0 = jnp.floor(x)
    y0 = jnp.floor(y)
    x1 = x0 + 1.0
    y1 = y0 + 1.0
    wx1 = x - x0
    wx0 = 1.0 - wx1
    wy1 = y - y0
    wy0 = 1.0 - wy1

    def gather(yi, xi):
        valid = ((xi >= 0) & (xi <= W - 1) & (yi >= 0) & (yi <= H - 1))
        xi_c = jnp.clip(xi, 0, W - 1).astype(jnp.int32)
        yi_c = jnp.clip(yi, 0, H - 1).astype(jnp.int32)
        vals = masks[:, yi_c, xi_c]                      # (N, P)
        return vals * valid.astype(masks.dtype)[None, :]

    return (gather(y0, x0) * (wy0 * wx0)[None, :]
            + gather(y0, x1) * (wy0 * wx1)[None, :]
            + gather(y1, x0) * (wy1 * wx0)[None, :]
            + gather(y1, x1) * (wy1 * wx1)[None, :])


@functools.partial(jax.jit,
                   static_argnames=('num_points', 'w_class', 'w_mask',
                                    'w_dice', 'point_tile'))
def _matcher_device_fn(pred_logits, pred_masks, labels, masks, key, *,
                       num_points, w_class, w_mask, w_dice, point_tile):
    """Everything device-side: point sampling (vmapped over batch) + kernel."""
    B, Q, NC = pred_logits.shape
    onehot = jax.nn.one_hot(labels, NC, dtype=jnp.float32)             # (B, M, NC)

    keys = jax.vmap(jax.random.fold_in, in_axes=(None, 0))(key, jnp.arange(B))
    coords = jax.vmap(
        lambda k: jax.random.uniform(k, (num_points, 2),
                                     dtype=jnp.float32))(keys)         # (B, P, 2)

    out_pts = jax.vmap(point_sample_bilinear)(pred_masks, coords)      # (B, Q, P)
    tgt_pts = jax.vmap(point_sample_bilinear)(masks, coords)           # (B, M, P)

    # bf16 operands for the kernel; out-mask logits pre-transposed to (B, P, Q)
    # so both MXU contractions need no in-kernel transposes and the output is
    # lane-dense along Q.
    out_pts_t = jnp.swapaxes(out_pts, 1, 2).astype(jnp.bfloat16)       # (B, P, Q)
    tgt_pts_b = tgt_pts.astype(jnp.bfloat16)                           # (B, M, P)

    return compute_cost_matrices(pred_logits.astype(jnp.float32), onehot,
                                 tgt_pts_b, out_pts_t,
                                 w_class, w_mask, w_dice, point_tile)


def _assignment(cost):
    """Min-cost 1-1 assignment on a (Q, M) cost matrix."""
    if _linear_sum_assignment is not None:
        r, c = _linear_sum_assignment(cost)
        return np.asarray(r), np.asarray(c)
    # TODO(synk): greedy approximation of Hungarian matching (scipy unavailable).
    C = np.array(cost, dtype=np.float64, copy=True)
    Q, M = C.shape
    rows, cols = [], []
    for _ in range(min(Q, M)):
        r, c = np.unravel_index(np.argmin(C), C.shape)
        rows.append(int(r))
        cols.append(int(c))
        C[r, :] = np.inf
        C[:, c] = np.inf
    order = np.argsort(rows)
    return np.asarray(rows)[order], np.asarray(cols)[order]


# ----------------------------------------------------------------------------
# MercyMatcher (JAX / Pallas version)
# ----------------------------------------------------------------------------
class MercyMatcher:
    def __init__(self, cost_class=1.0, cost_mask=1.0, cost_dice=1.0,
                 num_points=0, ignore_low=0.5, ignore_high=0.5,
                 max_num_fg=100, max_num_bg=100, point_tile=None):
        assert cost_class != 0 or cost_mask != 0 or cost_dice != 0, \
            'all costs cant be 0'
        self.cost_class = cost_class
        self.cost_mask = cost_mask
        self.cost_dice = cost_dice
        self.ignore_low = ignore_low
        self.ignore_high = ignore_high
        self.max_num_fg = max_num_fg
        self.max_num_bg = max_num_bg
        self.num_points = num_points
        self.point_tile = point_tile

    def forward(self, outputs, targets, key):
        pred_logits = jnp.asarray(outputs['pred_logits'], dtype=jnp.float32)
        pred_masks = jnp.asarray(outputs['pred_masks'], dtype=jnp.float32)
        B, Q, NC = pred_logits.shape

        # Stack targets (assumes equal #targets per batch for static shapes).
        labels = jnp.stack([t['labels'] for t in targets])                   # (B, M)
        masks = jnp.stack([t['masks'] for t in targets]).astype(jnp.float32) # (B, M, H, W)
        M = labels.shape[1]

        stacked = _matcher_device_fn(
            pred_logits, pred_masks, labels, masks, key,
            num_points=int(self.num_points),
            w_class=float(self.cost_class), w_mask=float(self.cost_mask),
            w_dice=float(self.cost_dice), point_tile=self.point_tile)
        stacked = np.asarray(jax.block_until_ready(stacked))   # (B, 2, M, Q)
        Cmat = np.transpose(stacked[:, 0], (0, 2, 1))          # (B, Q, M)
        IoU = np.transpose(stacked[:, 1], (0, 2, 1))           # (B, Q, M)

        positive_indices, negative_indices = [], []
        for b in range(B):
            ri, ci = _assignment(Cmat[b])
            iou_b = IoU[b].copy()
            for qi, gi in zip(ri, ci):
                iou_b[qi, :] = 0.0
                iou_b[qi, gi] = 1.0

            pos = np.argwhere(iou_b >= self.ignore_high)
            for thresh_pos in np.arange(self.ignore_high, 1.02, 0.02):
                pos = np.argwhere(iou_b >= thresh_pos)
                if pos.shape[0] <= self.max_num_fg:
                    break
            neg = np.argwhere(iou_b < self.ignore_low)
            if neg.shape[0] > self.max_num_bg:
                perm = np.random.permutation(neg.shape[0])
                neg = neg[perm[:self.max_num_bg]]

            positive_indices.append((pos[:, 0].astype(np.int64),
                                     pos[:, 1].astype(np.int64)))
            negative_indices.append((neg[:, 0].astype(np.int64),
                                     neg[:, 1].astype(np.int64)))
        return positive_indices, negative_indices

    __call__ = forward


# ----------------------------------------------------------------------------
if __name__ == "__main__":
    key = jax.random.PRNGKey(0)
    # Q = 128 exercises the fused (lane-aligned) single-MXU path; P = 256 with
    # point_tile = 128 exercises the 2-step point-axis reduction/accumulators.
    B, Q, NC, M, H, W, P = 2, 128, 5, 4, 16, 16, 256

    k1, k2, k3, k4, kp = jax.random.split(key, 5)
    pred_logits = jax.random.normal(k1, (B, Q, NC), dtype=jnp.float32)
    pred_masks = jax.random.normal(k2, (B, Q, H, W), dtype=jnp.float32)
    labels = jax.random.randint(k3, (B, M), 0, NC)
    tgt_masks = (jax.random.uniform(k4, (B, M, H, W)) > 0.5).astype(jnp.float32)

    outputs = {'pred_logits': pred_logits, 'pred_masks': pred_masks}
    targets = [{'labels': labels[b], 'masks': tgt_masks[b]} for b in range(B)]

    matcher = MercyMatcher(cost_class=1.0, cost_mask=1.0, cost_dice=1.0,
                           num_points=P, ignore_low=0.5, ignore_high=0.5,
                           max_num_fg=100, max_num_bg=100, point_tile=128)
    pos_idx, neg_idx = matcher(outputs, targets, key=kp)

    # Basic sanity: per-batch index tuples exist and are in range.
    assert len(pos_idx) == B and len(neg_idx) == B
    for (pi, pj), (ni, nj) in zip(pos_idx, neg_idx):
        assert pi.shape == pj.shape and ni.shape == nj.shape
        if pi.size:
            assert pi.max() < Q and pj.max() < M
        if ni.size:
            assert ni.max() < Q and nj.max() < M

    print("KERNEL_OK")
</pallas_src>

<mosaic_0001>
module attributes {stable_mosaic.version = 11 : i64} {
  func.func @matcher_cost_kernel(%arg0: i32, %arg1: i32, %arg2: memref<1x128x5xf32, #tpu.memory_space<vmem>>, %arg3: memref<1x4x5xf32, #tpu.memory_space<vmem>>, %arg4: memref<1x4x128xbf16, #tpu.memory_space<vmem>>, %arg5: memref<1x128x128xbf16, #tpu.memory_space<vmem>>, %arg6: memref<1x2x4x128xf32, #tpu.memory_space<vmem>>, %arg7: memref<4x128xf32, #tpu.memory_space<vmem>>, %arg8: memref<4x128xf32, #tpu.memory_space<vmem>>, %arg9: memref<1x128xf32, #tpu.memory_space<vmem>>, %arg10: memref<1x128xf32, #tpu.memory_space<vmem>>, %arg11: memref<4x1xf32, #tpu.memory_space<vmem>>) attributes {dimension_semantics = [#tpu.dimension_semantics<parallel>, #tpu.dimension_semantics<arbitrary>], iteration_bounds = array<i64: 2, 2>, scalar_prefetch = 0 : i64, scratch_operands = 5 : i64, tpu.core_type = #tpu.core_type<tc>, window_params = [{transform_indices = @transform_0, window_bounds = array<i64: 1, 128, 5>}, {transform_indices = @transform_1, window_bounds = array<i64: 1, 4, 5>}, {transform_indices = @transform_2, window_bounds = array<i64: 1, 4, 128>}, {transform_indices = @transform_3, window_bounds = array<i64: 1, 128, 128>}, {transform_indices = @transform_4, window_bounds = array<i64: 1, 2, 4, 128>}]} {
    %c0_i32 = arith.constant 0 : i32
    %0 = arith.cmpi eq, %arg1, %c0_i32 : i32
    %1 = arith.extui %0 : i1 to i32
    %c0_i32_0 = arith.constant 0 : i32
    %2 = arith.cmpi ne, %1, %c0_i32_0 : i32
    scf.if %2 {
      %cst_34 = arith.constant 0.000000e+00 : f32
      %53 = vector.broadcast %cst_34 : f32 to vector<4x128xf32>
      %c0_35 = arith.constant 0 : index
      %c0_36 = arith.constant 0 : index
      %54 = vector.load %arg7[%c0_35, %c0_36] : memref<4x128xf32, #tpu.memory_space<vmem>>, vector<4x128xf32>
      tpu.vector_store %arg7[%c0_35, %c0_36], %53 {strides = array<i32>} : memref<4x128xf32, #tpu.memory_space<vmem>>, vector<4x128xf32>,
      %cst_37 = arith.constant 0.000000e+00 : f32
      %55 = vector.broadcast %cst_37 : f32 to vector<4x128xf32>
      %c0_38 = arith.constant 0 : index
      %c0_39 = arith.constant 0 : index
      %56 = vector.load %arg8[%c0_38, %c0_39] : memref<4x128xf32, #tpu.memory_space<vmem>>, vector<4x128xf32>
      tpu.vector_store %arg8[%c0_38, %c0_39], %55 {strides = array<i32>} : memref<4x128xf32, #tpu.memory_space<vmem>>, vector<4x128xf32>,
      %cst_40 = arith.constant 0.000000e+00 : f32
      %57 = vector.broadcast %cst_40 : f32 to vector<1x128xf32>
      %c0_41 = arith.constant 0 : index
      %c0_42 = arith.constant 0 : index
      %58 = vector.load %arg9[%c0_41, %c0_42] : memref<1x128xf32, #tpu.memory_space<vmem>>, vector<1x128xf32>
      tpu.vector_store %arg9[%c0_41, %c0_42], %57 {strides = array<i32>} : memref<1x128xf32, #tpu.memory_space<vmem>>, vector<1x128xf32>,
      %cst_43 = arith.constant 0.000000e+00 : f32
      %59 = vector.broadcast %cst_43 : f32 to vector<1x128xf32>
      %c0_44 = arith.constant 0 : index
      %c0_45 = arith.constant 0 : index
      %60 = vector.load %arg10[%c0_44, %c0_45] : memref<1x128xf32, #tpu.memory_space<vmem>>, vector<1x128xf32>
      tpu.vector_store %arg10[%c0_44, %c0_45], %59 {strides = array<i32>} : memref<1x128xf32, #tpu.memory_space<vmem>>, vector<1x128xf32>,
      %cst_46 = arith.constant 0.000000e+00 : f32
      %61 = vector.broadcast %cst_46 : f32 to vector<4x1xf32>
      %c0_47 = arith.constant 0 : index
      %c0_48 = arith.constant 0 : index
      %62 = vector.load %arg11[%c0_47, %c0_48] : memref<4x1xf32, #tpu.memory_space<vmem>>, vector<4x1xf32>
      tpu.vector_store %arg11[%c0_47, %c0_48], %61 {strides = array<i32>} : memref<4x1xf32, #tpu.memory_space<vmem>>, vector<4x1xf32>,
    } else {
    }
    %c0 = arith.constant 0 : index
    %c0_1 = arith.constant 0 : index
    %c0_2 = arith.constant 0 : index
    %3 = vector.load %arg5[%c0, %c0_1, %c0_2] : memref<1x128x128xbf16, #tpu.memory_space<vmem>>, vector<1x128x128xbf16>
    %4 = vector.shape_cast %3 : vector<1x128x128xbf16> to vector<128x128xbf16>
    %c0_3 = arith.constant 0 : index
    %c0_4 = arith.constant 0 : index
    %c0_5 = arith.constant 0 : index
    %5 = vector.load %arg4[%c0_3, %c0_4, %c0_5] : memref<1x4x128xbf16, #tpu.memory_space<vmem>>, vector<1x4x128xbf16>
    %6 = vector.shape_cast %5 : vector<1x4x128xbf16> to vector<4x128xbf16>
    %7 = arith.extf %4 : vector<128x128xbf16> to vector<128x128xf32>
    %8 = arith.negf %7 : vector<128x128xf32>
    %9 = math.exp %8 : vector<128x128xf32>
    %cst = arith.constant 1.000000e+00 : f32
    %10 = vector.broadcast %cst : f32 to vector<128x128xf32>
    %11 = arith.addf %10, %9 : vector<128x128xf32>
    %12 = arith.divf %10, %11 : vector<128x128xf32>
    %cst_6 = arith.constant 0.000000e+00 : f32
    %13 = vector.broadcast %cst_6 : f32 to vector<128x128xf32>
    %14 = arith.maximumf %7, %13 : vector<128x128xf32>
    %15 = math.absf %7 : vector<128x128xf32>
    %cst_7 = arith.constant 0.000000e+00 : f32
    %16 = vector.broadcast %cst_7 : f32 to vector<128x128xf32>
    %17 = arith.subf %16, %15 : vector<128x128xf32>
    %18 = math.exp %17 : vector<128x128xf32>
    %19 = math.log1p %18 : vector<128x128xf32>
    %20 = arith.addf %14, %19 : vector<128x128xf32>
    %c0_8 = arith.constant 0 : index
    %c0_9 = arith.constant 0 : index
    %21 = vector.load %arg9[%c0_8, %c0_9] : memref<1x128xf32, #tpu.memory_space<vmem>>, vector<1x128xf32>
    %cst_10 = arith.constant dense<0.000000e+00> : vector<128xf32>
    %22 = vector.multi_reduction <add>, %20, %cst_10 [0] : vector<128x128xf32> to vector<128xf32>
    %23 = vector.shape_cast %22 : vector<128xf32> to vector<1x128xf32>
    %24 = arith.addf %21, %23 : vector<1x128xf32>
    %c0_11 = arith.constant 0 : index
    %c0_12 = arith.constant 0 : index
    %25 = vector.load %arg9[%c0_11, %c0_12] : memref<1x128xf32, #tpu.memory_space<vmem>>, vector<1x128xf32>
    tpu.vector_store %arg9[%c0_11, %c0_12], %24 {strides = array<i32>} : memref<1x128xf32, #tpu.memory_space<vmem>>, vector<1x128xf32>,
    %c0_13 = arith.constant 0 : index
    %c0_14 = arith.constant 0 : index
    %26 = vector.load %arg10[%c0_13, %c0_14] : memref<1x128xf32, #tpu.memory_space<vmem>>, vector<1x128xf32>
    %cst_15 = arith.constant dense<0.000000e+00> : vector<128xf32>
    %27 = vector.multi_reduction <add>, %12, %cst_15 [0] : vector<128x128xf32> to vector<128xf32>
    %28 = vector.shape_cast %27 : vector<128xf32> to vector<1x128xf32>
    %29 = arith.addf %26, %28 : vector<1x128xf32>
    %c0_16 = arith.constant 0 : index
    %c0_17 = arith.constant 0 : index
    %30 = vector.load %arg10[%c0_16, %c0_17] : memref<1x128xf32, #tpu.memory_space<vmem>>, vector<1x128xf32>
    tpu.vector_store %arg10[%c0_16, %c0_17], %29 {strides = array<i32>} : memref<1x128xf32, #tpu.memory_space<vmem>>, vector<1x128xf32>,
    %c0_18 = arith.constant 0 : index
    %c0_19 = arith.constant 0 : index
    %31 = vector.load %arg11[%c0_18, %c0_19] : memref<4x1xf32, #tpu.memory_space<vmem>>, vector<4x1xf32>
    %32 = arith.extf %6 : vector<4x128xbf16> to vector<4x128xf32>
    %cst_20 = arith.constant dense<0.000000e+00> : vector<4xf32>
    %33 = vector.multi_reduction <add>, %32, %cst_20 [1] : vector<4x128xf32> to vector<4xf32>
    %34 = vector.shape_cast %33 : vector<4xf32> to vector<4x1xf32>
    %35 = arith.addf %31, %34 : vector<4x1xf32>
    %c0_21 = arith.constant 0 : index
    %c0_22 = arith.constant 0 : index
    %36 = vector.load %arg11[%c0_21, %c0_22] : memref<4x1xf32, #tpu.memory_space<vmem>>, vector<4x1xf32>
    tpu.vector_store %arg11[%c0_21, %c0_22], %35 {strides = array<i32>} : memref<4x1xf32, #tpu.memory_space<vmem>>, vector<4x1xf32>,
    %cst_23 = arith.constant 0.000000e+00 : bf16
    %37 = vector.broadcast %cst_23 : bf16 to vector<128x128xbf16>
    %38 = arith.subf %37, %4 : vector<128x128xbf16>
    %39 = arith.truncf %12 : vector<128x128xf32> to vector<128x128xbf16>
    %40 = tpu.concatenate %38, %39 in 1 : vector<128x128xbf16>, vector<128x128xbf16> -> vector<128x256xbf16>
    %cst_24 = arith.constant dense<0.000000e+00> : vector<4x256xf32>
    %41 = tpu.matmul %6, %40, %cst_24 {dimension_numbers = #tpu.dot_dimension_numbers<[1], [0], [0], [1], [0, 0, 1, 1], [], []>} : vector<4x128xbf16>, vector<128x256xbf16>, vector<4x256xf32> -> vector<4x256xf32>
    %c0_25 = arith.constant 0 : index
    %c0_26 = arith.constant 0 : index
    %42 = vector.load %arg7[%c0_25, %c0_26] : memref<4x128xf32, #tpu.memory_space<vmem>>, vector<4x128xf32>
    %43 = vector.extract_strided_slice %41 {offsets = [0, 0], sizes = [4, 128], strides = [1, 1]} : vector<4x256xf32> to vector<4x128xf32>
    %44 = arith.addf %42, %43 : vector<4x128xf32>
    %c0_27 = arith.constant 0 : index
    %c0_28 = arith.constant 0 : index
    %45 = vector.load %arg7[%c0_27, %c0_28] : memref<4x128xf32, #tpu.memory_space<vmem>>, vector<4x128xf32>
    tpu.vector_store %arg7[%c0_27, %c0_28], %44 {strides = array<i32>} : memref<4x128xf32, #tpu.memory_space<vmem>>, vector<4x128xf32>,
    %c0_29 = arith.constant 0 : index
    %c0_30 = arith.constant 0 : index
    %46 = vector.load %arg8[%c0_29, %c0_30] : memref<4x128xf32, #tpu.memory_space<vmem>>, vector<4x128xf32>
    %47 = vector.extract_strided_slice %41 {offsets = [0, 128], sizes = [4, 128], strides = [1, 1]} : vector<4x256xf32> to vector<4x128xf32>
    %48 = arith.addf %46, %47 : vector<4x128xf32>
    %c0_31 = arith.constant 0 : index
    %c0_32 = arith.constant 0 : index
    %49 = vector.load %arg8[%c0_31, %c0_32] : memref<4x128xf32, #tpu.memory_space<vmem>>, vector<4x128xf32>
    tpu.vector_store %arg8[%c0_31, %c0_32], %48 {strides = array<i32>} : memref<4x128xf32, #tpu.memory_space<vmem>>, vector<4x128xf32>,
    %c1_i32 = arith.constant 1 : i32
    %50 = arith.cmpi eq, %arg1, %c1_i32 : i32
    %51 = arith.extui %50 : i1 to i32
    %c0_i32_33 = arith.constant 0 : i32
    %52 = arith.cmpi ne, %51, %c0_i32_33 : i32
    scf.if %52 {
      %c0_34 = arith.constant 0 : index
      %c0_35 = arith.constant 0 : index
      %53 = vector.load %arg7[%c0_34, %c0_35] : memref<4x128xf32, #tpu.memory_space<vmem>>, vector<4x128xf32>
      %c0_36 = arith.constant 0 : index
      %c0_37 = arith.constant 0 : index
      %54 = vector.load %arg9[%c0_36, %c0_37] : memref<1x128xf32, #tpu.memory_space<vmem>>, vector<1x128xf32>
      %55 = vector.broadcast %54 : vector<1x128xf32> to vector<4x128xf32>
      %56 = arith.addf %53, %55 : vector<4x128xf32>
      %cst_38 = arith.constant 3.906250e-03 : f32
      %57 = vector.broadcast %cst_38 : f32 to vector<4x128xf32>
      %58 = arith.mulf %56, %57 : vector<4x128xf32>
      %c0_39 = arith.constant 0 : index
      %c0_40 = arith.constant 0 : index
      %59 = vector.load %arg10[%c0_39, %c0_40] : memref<1x128xf32, #tpu.memory_space<vmem>>, vector<1x128xf32>
      %c0_41 = arith.constant 0 : index
      %c0_42 = arith.constant 0 : index
      %60 = vector.load %arg11[%c0_41, %c0_42] : memref<4x1xf32, #tpu.memory_space<vmem>>, vector<4x1xf32>
      %61 = vector.broadcast %59 : vector<1x128xf32> to vector<4x128xf32>
      %62 = vector.broadcast %60 : vector<4x1xf32> to vector<4x128xf32>
      %63 = arith.addf %61, %62 : vector<4x128xf32>
      %c0_43 = arith.constant 0 : index
      %c0_44 = arith.constant 0 : index
      %64 = vector.load %arg8[%c0_43, %c0_44] : memref<4x128xf32, #tpu.memory_space<vmem>>, vector<4x128xf32>
      %cst_45 = arith.constant 2.000000e+00 : f32
      %65 = vector.broadcast %cst_45 : f32 to vector<4x128xf32>
      %66 = arith.mulf %65, %64 : vector<4x128xf32>
      %cst_46 = arith.constant 1.000000e+00 : f32
      %67 = vector.broadcast %cst_46 : f32 to vector<4x128xf32>
      %68 = arith.addf %66, %67 : vector<4x128xf32>
      %cst_47 = arith.constant 1.000000e+00 : f32
      %69 = vector.broadcast %cst_47 : f32 to vector<4x128xf32>
      %70 = arith.addf %63, %69 : vector<4x128xf32>
      %71 = arith.divf %68, %70 : vector<4x128xf32>
      %cst_48 = arith.constant 1.000000e+00 : f32
      %72 = vector.broadcast %cst_48 : f32 to vector<4x128xf32>
      %73 = arith.subf %72, %71 : vector<4x128xf32>
      %cst_49 = arith.constant 1.000000e+00 : f32
      %74 = vector.broadcast %cst_49 : f32 to vector<4x128xf32>
      %75 = arith.subf %74, %73 : vector<4x128xf32>
      %c0_50 = arith.constant 0 : index
      %c0_51 = arith.constant 0 : index
      %c0_52 = arith.constant 0 : index
      %76 = vector.load %arg2[%c0_50, %c0_51, %c0_52] : memref<1x128x5xf32, #tpu.memory_space<vmem>>, vector<1x128x5xf32>
      %77 = vector.shape_cast %76 : vector<1x128x5xf32> to vector<128x5xf32>
      %c0_53 = arith.constant 0 : index
      %c0_54 = arith.constant 0 : index
      %c0_55 = arith.constant 0 : index
      %78 = vector.load %arg3[%c0_53, %c0_54, %c0_55] : memref<1x4x5xf32, #tpu.memory_space<vmem>>, vector<1x4x5xf32>
      %79 = vector.shape_cast %78 : vector<1x4x5xf32> to vector<4x5xf32>
      %cst_56 = arith.constant dense<0xFF800000> : vector<128xf32>
      %80 = vector.multi_reduction <maximumf>, %77, %cst_56 [1] : vector<128x5xf32> to vector<128xf32>
      %81 = vector.shape_cast %80 : vector<128xf32> to vector<128x1xf32>
      %82 = vector.broadcast %81 : vector<128x1xf32> to vector<128x5xf32>
      %83 = arith.subf %77, %82 : vector<128x5xf32>
      %84 = math.exp %83 : vector<128x5xf32>
      %cst_57 = arith.constant dense<0.000000e+00> : vector<128xf32>
      %85 = vector.multi_reduction <add>, %84, %cst_57 [1] : vector<128x5xf32> to vector<128xf32>
      %86 = vector.shape_cast %85 : vector<128xf32> to vector<128x1xf32>
      %87 = tpu.reciprocal %86 {approx = true} : vector<128x1xf32> -> vector<128x1xf32>
      %88 = vector.broadcast %87 : vector<128x1xf32> to vector<128x5xf32>
      %89 = arith.mulf %84, %88 : vector<128x5xf32>
      "tpu.trace_start"() <{level = 10 : i32, message = "mc,qc->mq"}> : () -> ()
      %cst_58 = arith.constant dense<0.000000e+00> : vector<4x128xf32>
      %90 = tpu.matmul %79, %89, %cst_58 {dimension_numbers = #tpu.dot_dimension_numbers<[1], [1], [0], [0], [0, 0, 1, 0], [], []>} : vector<4x5xf32>, vector<128x5xf32>, vector<4x128xf32> -> vector<4x128xf32>
      "tpu.trace_stop"() : () -> ()
      %cst_59 = arith.constant 0.000000e+00 : f32
      %91 = vector.broadcast %cst_59 : f32 to vector<4x128xf32>
      %92 = arith.subf %91, %90 : vector<4x128xf32>
      %cst_60 = arith.constant 1.000000e+00 : f32
      %93 = vector.broadcast %cst_60 : f32 to vector<4x128xf32>
      %94 = arith.mulf %93, %58 : vector<4x128xf32>
      %cst_61 = arith.constant 1.000000e+00 : f32
      %95 = vector.broadcast %cst_61 : f32 to vector<4x128xf32>
      %96 = arith.mulf %95, %92 : vector<4x128xf32>
      %97 = arith.addf %94, %96 : vector<4x128xf32>
      %cst_62 = arith.constant 1.000000e+00 : f32
      %98 = vector.broadcast %cst_62 : f32 to vector<4x128xf32>
      %99 = arith.mulf %98, %73 : vector<4x128xf32>
      %100 = arith.addf %97, %99 : vector<4x128xf32>
      %c0_63 = arith.constant 0 : index
      %c0_64 = arith.constant 0 : index
      %c0_65 = arith.constant 0 : index
      %c0_66 = arith.constant 0 : index
      %101 = vector.load %arg6[%c0_63, %c0_64, %c0_65, %c0_66] : memref<1x2x4x128xf32, #tpu.memory_space<vmem>>, vector<1x1x4x128xf32>
      %102 = vector.shape_cast %101 : vector<1x1x4x128xf32> to vector<4x128xf32>
      %103 = vector.shape_cast %100 : vector<4x128xf32> to vector<1x1x4x128xf32>
      tpu.vector_store %arg6[%c0_63, %c0_64, %c0_65, %c0_66], %103 {strides = array<i32>} : memref<1x2x4x128xf32, #tpu.memory_space<vmem>>, vector<1x1x4x128xf32>,
      %c0_67 = arith.constant 0 : index
      %c1 = arith.constant 1 : index
      %c0_68 = arith.constant 0 : index
      %c0_69 = arith.constant 0 : index
      %104 = vector.load %arg6[%c0_67, %c1, %c0_68, %c0_69] : memref<1x2x4x128xf32, #tpu.memory_space<vmem>>, vector<1x1x4x128xf32>
      %105 = vector.shape_cast %104 : vector<1x1x4x128xf32> to vector<4x128xf32>
      %106 = vector.shape_cast %75 : vector<4x128xf32> to vector<1x1x4x128xf32>
      tpu.vector_store %arg6[%c0_67, %c1, %c0_68, %c0_69], %106 {strides = array<i32>} : memref<1x2x4x128xf32, #tpu.memory_space<vmem>>, vector<1x1x4x128xf32>,
    } else {
    }
    return
  }
  func.func @transform_0(%arg0: i32, %arg1: i32) -> (i32, i32, i32) {
    %c0_i32 = arith.constant 0 : i32
    %c0_i32_0 = arith.constant 0 : i32
    %c0_i32_1 = arith.constant 0 : i32
    return %arg0, %c0_i32, %c0_i32_0 : i32, i32, i32
  }
  func.func @transform_1(%arg0: i32, %arg1: i32) -> (i32, i32, i32) {
    %c0_i32 = arith.constant 0 : i32
    %c0_i32_0 = arith.constant 0 : i32
    %c0_i32_1 = arith.constant 0 : i32
    return %arg0, %c0_i32, %c0_i32_0 : i32, i32, i32
  }
  func.func @transform_2(%arg0: i32, %arg1: i32) -> (i32, i32, i32) {
    %c0_i32 = arith.constant 0 : i32
    %c0_i32_0 = arith.constant 0 : i32
    return %arg0, %c0_i32, %arg1 : i32, i32, i32
  }
  func.func @transform_3(%arg0: i32, %arg1: i32) -> (i32, i32, i32) {
    %c0_i32 = arith.constant 0 : i32
    %c0_i32_0 = arith.constant 0 : i32
    return %arg0, %arg1, %c0_i32 : i32, i32, i32
  }
  func.func @transform_4(%arg0: i32, %arg1: i32) -> (i32, i32, i32, i32) {
    %c0_i32 = arith.constant 0 : i32
    %c0_i32_0 = arith.constant 0 : i32
    %c0_i32_1 = arith.constant 0 : i32
    %c0_i32_2 = arith.constant 0 : i32
    return %arg0, %c0_i32, %c0_i32_0, %c0_i32_1 : i32, i32, i32, i32
  }
}

</mosaic_0001>

<llo_original>
// kernel: _matcher_device_fn.3
$region0: #{_matcher_device_fn.3}
  #allocation0 [shape = 'u32[]', space=smem, size = 0x4, offset = 0x4, fixed_abs, tag = 'smem constant byte address 0x4 - core index']
  #allocation1 [shape = 'u32[144,128]{1,0:T(1,128)}', space=vmem, size = 0x12000, scoped, tag = 'internal scratch']
  #allocation2 [shape = 'f32[4,128]{1,0:T(4,128)}', space=vmem, size = 0x800, scoped, tag = 'scratch operand']
  #allocation3 [shape = 'f32[4,128]{1,0:T(4,128)}', space=vmem, size = 0x800, scoped, tag = 'scratch operand']
  #allocation4 [shape = 'f32[1,128]{1,0:T(1,128)}', space=vmem, size = 0x200, scoped, tag = 'scratch operand']
  #allocation5 [shape = 'f32[1,128]{1,0:T(1,128)}', space=vmem, size = 0x200, scoped, tag = 'scratch operand']
  #allocation6 [shape = 'f32[4,1]{1,0:T(4,128)}', space=vmem, size = 0x800, scoped, tag = 'scratch operand']
  %s0 = inlined_call_operand.vmem [shape: f32[2,128,5], index: 0, kind: input, shape index: {}]
  %s1 = inlined_call_operand.vmem [shape: f32[2,4,5], index: 1, kind: input, shape index: {}]
  %s2 = inlined_call_operand.vmem [shape: bf16[2,4,256], index: 2, kind: input, shape index: {}]
  %s3 = inlined_call_operand.vmem [shape: bf16[2,256,128], index: 3, kind: input, shape index: {}]
  %s4 = inlined_call_operand.hbm [shape: f32[2,2,4,128], index: 4, kind: output, shape index: {}]
  %s5 = sld [smem:[#allocation0]]
  $region57: #{_matcher_device_fn.3} parent=0
    _
  %s7 = ssub.s32 1, %s5
  %s8 = scalar_select 0, %s7, %s5
  $region1: #{_matcher_device_fn.3} parent=0
    #allocation7 [shape = 'u8[8192]{0}', space=vmem, size = 0x2000, scoped, tag = 'output window, operand 0']
    #allocation8 [shape = 's32[2]{0}', space=sflag, size = 0x8, scoped, tag = 'scoped memory for _matcher_device_fn.3']
    %9 = vsyncpa [#allocation8], 0
    %s10 = scalar_lea.sflag [#allocation8], 1
    %11 = vsyncpa %s10, 0
    loop: start=0, step=1, limit=6
    $region2: #{_matcher_device_fn.3} parent=1 // loop_pre_header
      _
    $region3: #{_matcher_device_fn.3} parent=1 // loop_header
      %s13 = sphi 0, %s17
      %p14 = scmp.ge.s32.totalorder %s13, 6
      %s20 = sphi 0, %s32
      %s21 = sphi 0, %s28
      %s22 = sphi 0, %s20
      %s23 = sphi 0, %s21
      %s24 = sphi 0, %s22
      %s25 = sphi 0, %s23
      %s35 = sphi 0, %s37
      %s38 = sphi 0, %s35
      %s39 = sphi 0, %s38
      %s55 = sphi 0, %s39
      %s61 = sphi 0, %s63
      %s64 = sphi 0, %s61
      %s65 = sphi 0, %s64
      %s81 = sphi 0, %s65
      %s89 = sphi 0, %s91
      %s92 = sphi 0, %s89
      %s93 = sphi 0, %s92
      %s109 = sphi 0, %s93
      %s117 = sphi 0, %s119
      %s120 = sphi 0, %s117
      %s121 = sphi 0, %s120
      %s137 = sphi 0, %s121
      %s143 = sphi 0, %s145
      %s146 = sphi 0, %s143
      %s147 = sphi 0, %s146
      %s163 = sphi 0, %s147
    $region4: #{_matcher_device_fn.3} parent=1 // loop_header_branch
      %16 = sbr.rel (%p14) target = $region8
    $region5: #{_matcher_device_fn.3} parent=1 // loop_body
      %s18 = ssub.s32 %s13, 1
      %s19 = ssub.s32 %s13, 2
      %s26 = sadd.s32 1, %s21
      %p27 = scmp.ge.s32.totalorder %s26, 2
      %s28 = scalar_select %p27, 0, %s26
      %s29 = sadd.s32 1, %s20
      %s30 = scalar_select %p27, %s29, %s20
      %p31 = scmp.ge.s32.totalorder %s30, 2
      %s32 = scalar_select %p31, 0, %s30
      %s33 = ssub.s32 %s20, %s32
      %p34 = scmp.eq.s32.totalorder %s33, 0
      %s36 = sadd.s32 %s35, 1
      %s37 = scalar_select %p34, %s35, %s36
      %p40 = pneg %p34
      %p41 = scmp.eq.s32.totalorder %s13, 3
      %p42 = por %p40, %p41
      %p43 = scmp.ne.s32.totalorder %s35, %s38
      %p44 = scmp.eq.s32.totalorder %s13, 0
      %p45 = por %p43, %p44
      %p46 = scmp.ne.s32.totalorder %s35, %s38
      %p47 = scmp.eq.s32.totalorder %s18, 3
      %p48 = por %p46, %p47
      %p49 = scmp.ne.s32.totalorder %s38, %s39
      %p50 = scmp.eq.s32.totalorder %s18, 0
      %p51 = por %p49, %p50
      %p52 = scmp.ne.s32.totalorder %s38, %s39
      %p53 = scmp.eq.s32.totalorder %s19, 3
      %p54 = por %p52, %p53
      %p56 = scmp.ne.s32.totalorder %s39, %s55
      %p57 = scmp.eq.s32.totalorder %s19, 0
      %p58 = por %p56, %p57
      %s59 = ssub.s32 %s20, %s32
      %p60 = scmp.eq.s32.totalorder %s59, 0
      %s62 = sadd.s32 %s61, 1
      %s63 = scalar_select %p60, %s61, %s62
      %p66 = pneg %p60
      %p67 = scmp.eq.s32.totalorder %s13, 3
      %p68 = por %p66, %p67
      %p69 = scmp.ne.s32.totalorder %s61, %s64
      %p70 = scmp.eq.s32.totalorder %s13, 0
      %p71 = por %p69, %p70
      %p72 = scmp.ne.s32.totalorder %s61, %s64
      %p73 = scmp.eq.s32.totalorder %s18, 3
      %p74 = por %p72, %p73
      %p75 = scmp.ne.s32.totalorder %s64, %s65
      %p76 = scmp.eq.s32.totalorder %s18, 0
      %p77 = por %p75, %p76
      %p78 = scmp.ne.s32.totalorder %s64, %s65
      %p79 = scmp.eq.s32.totalorder %s19, 3
      %p80 = por %p78, %p79
      %p82 = scmp.ne.s32.totalorder %s65, %s81
      %p83 = scmp.eq.s32.totalorder %s19, 0
      %p84 = por %p82, %p83
      %s85 = ssub.s32 %s20, %s32
      %s86 = ssub.s32 %s21, %s28
      %s87 = sor.u32 %s85, %s86
      %p88 = scmp.eq.s32.totalorder %s87, 0
      %s90 = sadd.s32 %s89, 1
      %s91 = scalar_select %p88, %s89, %s90
      %p94 = pneg %p88
      %p95 = scmp.eq.s32.totalorder %s13, 3
      %p96 = por %p94, %p95
      %p97 = scmp.ne.s32.totalorder %s89, %s92
      %p98 = scmp.eq.s32.totalorder %s13, 0
      %p99 = por %p97, %p98
      %p100 = scmp.ne.s32.totalorder %s89, %s92
      %p101 = scmp.eq.s32.totalorder %s18, 3
      %p102 = por %p100, %p101
      %p103 = scmp.ne.s32.totalorder %s92, %s93
      %p104 = scmp.eq.s32.totalorder %s18, 0
      %p105 = por %p103, %p104
      %p106 = scmp.ne.s32.totalorder %s92, %s93
      %p107 = scmp.eq.s32.totalorder %s19, 3
      %p108 = por %p106, %p107
      %p110 = scmp.ne.s32.totalorder %s93, %s109
      %p111 = scmp.eq.s32.totalorder %s19, 0
      %p112 = por %p110, %p111
      %s113 = ssub.s32 %s20, %s32
      %s114 = ssub.s32 %s21, %s28
      %s115 = sor.u32 %s113, %s114
      %p116 = scmp.eq.s32.totalorder %s115, 0
      %s118 = sadd.s32 %s117, 1
      %s119 = scalar_select %p116, %s117, %s118
      %p122 = pneg %p116
      %p123 = scmp.eq.s32.totalorder %s13, 3
      %p124 = por %p122, %p123
      %p125 = scmp.ne.s32.totalorder %s117, %s120
      %p126 = scmp.eq.s32.totalorder %s13, 0
      %p127 = por %p125, %p126
      %p128 = scmp.ne.s32.totalorder %s117, %s120
      %p129 = scmp.eq.s32.totalorder %s18, 3
      %p130 = por %p128, %p129
      %p131 = scmp.ne.s32.totalorder %s120, %s121
      %p132 = scmp.eq.s32.totalorder %s18, 0
      %p133 = por %p131, %p132
      %p134 = scmp.ne.s32.totalorder %s120, %s121
      %p135 = scmp.eq.s32.totalorder %s19, 3
      %p136 = por %p134, %p135
      %p138 = scmp.ne.s32.totalorder %s121, %s137
      %p139 = scmp.eq.s32.totalorder %s19, 0
      %p140 = por %p138, %p139
      %s141 = ssub.s32 %s20, %s32
      %p142 = scmp.eq.s32.totalorder %s141, 0
      %s144 = sadd.s32 %s143, 1
      %s145 = scalar_select %p142, %s143, %s144
      %p148 = pneg %p142
      %p149 = scmp.eq.s32.totalorder %s13, 3
      %p150 = por %p148, %p149
      %p151 = scmp.ne.s32.totalorder %s143, %s146
      %p152 = scmp.eq.s32.totalorder %s13, 0
      %p153 = por %p151, %p152
      %p154 = scmp.ne.s32.totalorder %s143, %s146
      %p155 = scmp.eq.s32.totalorder %s18, 3
      %p156 = por %p154, %p155
      %p157 = scmp.ne.s32.totalorder %s146, %s147
      %p158 = scmp.eq.s32.totalorder %s18, 0
      %p159 = por %p157, %p158
      %p160 = scmp.ne.s32.totalorder %s146, %s147
      %p161 = scmp.eq.s32.totalorder %s19, 3
      %p162 = por %p160, %p161
      %p164 = scmp.ne.s32.totalorder %s147, %s163
      %p165 = scmp.eq.s32.totalorder %s19, 0
      %p166 = por %p164, %p165
      %p167 = scmp.le.s32.totalorder 1, %s13
      %p168 = scmp.lt.s32.totalorder %s13, 5
      %p169 = pnand %p167, %p168
      %p170 = pneg %p169
      // Predicated region
      $region9: #{_matcher_device_fn.3} parent=5 // pred_check
        _
      $region10: #{_matcher_device_fn.3} parent=5 // pred_check_branch
        %172 = sbr.rel (%p169) target = $region12
      $region11: #{_matcher_device_fn.3} parent=5 // pred_region
        %s173 = ssub.s32 %s13, 1
      $region12: #{_matcher_device_fn.3} parent=5 // pred_fallthru
        _
      %p174 = scmp.lt.s32.totalorder %s13, 4
      // Predicated region
      $region13: #{_matcher_device_fn.3} parent=5 // pred_check
        %p175 = pneg %p174
      $region14: #{_matcher_device_fn.3} parent=5 // pred_check_branch
        %177 = sbr.rel (%p175) target = $region16
      $region15: #{_matcher_device_fn.3} parent=5 // pred_region
        // Predicated region
        $region17: #{_matcher_device_fn.3} parent=15 // pred_check
          %p178 = pneg %p45
        $region18: #{_matcher_device_fn.3} parent=15 // pred_check_branch
          %180 = sbr.rel (%p178) target = $region20
        $region19: #{_matcher_device_fn.3} parent=15 // pred_region
          %p181 = scmp.lt.s32.totalorder %s20, 1
          %s182 = scalar_select %p181, %s20, 1
          %s183 = smul.addr %s182, 16
          %s184 = smul.addr %s183, 8
          %s185 = scalar_lea.vmem %s0, %s184
        $region20: #{_matcher_device_fn.3} parent=15 // pred_fallthru
          _
        // Predicated region
        $region21: #{_matcher_device_fn.3} parent=15 // pred_check
          %p186 = pneg %p71
        $region22: #{_matcher_device_fn.3} parent=15 // pred_check_branch
          %188 = sbr.rel (%p186) target = $region24
        $region23: #{_matcher_device_fn.3} parent=15 // pred_region
          %p189 = scmp.lt.s32.totalorder %s20, 1
          %s190 = scalar_select %p189, %s20, 1
          %s191 = smul.addr %s190, 4
          %s192 = scalar_lea.vmem %s1, %s191
        $region24: #{_matcher_device_fn.3} parent=15 // pred_fallthru
          _
        // Predicated region
        $region25: #{_matcher_device_fn.3} parent=15 // pred_check
          %p193 = pneg %p99
        $region26: #{_matcher_device_fn.3} parent=15 // pred_check_branch
          %195 = sbr.rel (%p193) target = $region28
        $region27: #{_matcher_device_fn.3} parent=15 // pred_region
          %p196 = scmp.lt.s32.totalorder %s20, 1
          %s197 = scalar_select %p196, %s20, 1
          %p198 = scmp.lt.s32.totalorder %s21, 1
          %s199 = scalar_select %p198, %s21, 1
          %s200 = smul.addr %s197, 2
          %s201 = sadd.s32 %s199, %s200
          %s202 = smul.addr %s201, 2
          %s203 = scalar_lea.vmem %s2, %s202
        $region28: #{_matcher_device_fn.3} parent=15 // pred_fallthru
          _
        // Predicated region
        $region29: #{_matcher_device_fn.3} parent=15 // pred_check
          %p204 = pneg %p127
        $region30: #{_matcher_device_fn.3} parent=15 // pred_check_branch
          %206 = sbr.rel (%p204) target = $region32
        $region31: #{_matcher_device_fn.3} parent=15 // pred_region
          %s207 = smul.u32 16, %s21
          %p208 = scmp.lt.s32.totalorder %s20, 1
          %s209 = scalar_select %p208, %s20, 1
          %p210 = scmp.lt.s32.totalorder %s207, 31
          %s211 = scalar_select %p210, %s207, 31
          %s212 = smul.addr %s209, 32
          %s213 = sadd.s32 %s211, %s212
          %s214 = smul.addr %s213, 4
          %s215 = scalar_lea.vmem %s3, %s214
          %s216 = smul.u32 16, %s21
        $region32: #{_matcher_device_fn.3} parent=15 // pred_fallthru
          _
      $region16: #{_matcher_device_fn.3} parent=5 // pred_fallthru
        _
      %p217 = scmp.le.s32.totalorder 1, %s13
      %p218 = scmp.lt.s32.totalorder %s13, 5
      %p219 = pnand %p217, %p218
      %p220 = pneg %p219
      // Predicated region
      $region33: #{_matcher_device_fn.3} parent=5 // pred_check
        _
      $region34: #{_matcher_device_fn.3} parent=5 // pred_check_branch
        %222 = sbr.rel (%p219) target = $region36
      $region35: #{_matcher_device_fn.3} parent=5 // pred_region
        %s223 = ssub.s32 %s13, 1
        %p224 = scmp.lt.s32.totalorder %s22, 1
        %s225 = scalar_select %p224, %s22, 1
        %s226 = smul.addr %s225, 16
        %s227 = smul.addr %s226, 8
        %s228 = scalar_lea.vmem %s0, %s227
        %p229 = pneg %p51
        %p230 = pneg %p48
        %p231 = scmp.lt.s32.totalorder %s22, 1
        %s232 = scalar_select %p231, %s22, 1
        %s233 = smul.addr %s232, 4
        %s234 = scalar_lea.vmem %s1, %s233
        %p235 = pneg %p77
        %p236 = pneg %p74
        %p237 = scmp.lt.s32.totalorder %s22, 1
        %s238 = scalar_select %p237, %s22, 1
        %p239 = scmp.lt.s32.totalorder %s23, 1
        %s240 = scalar_select %p239, %s23, 1
        %s241 = smul.addr %s238, 2
        %s242 = sadd.s32 %s240, %s241
        %s243 = smul.addr %s242, 2
        %s244 = scalar_lea.vmem %s2, %s243
        %p245 = pneg %p105
        %p246 = pneg %p102
        %s247 = smul.u32 16, %s23
        %p248 = scmp.lt.s32.totalorder %s22, 1
        %s249 = scalar_select %p248, %s22, 1
        %p250 = scmp.lt.s32.totalorder %s247, 31
        %s251 = scalar_select %p250, %s247, 31
        %s252 = smul.addr %s249, 32
        %s253 = sadd.s32 %s251, %s252
        %s254 = smul.addr %s253, 4
        %s255 = scalar_lea.vmem %s3, %s254
        %p256 = pneg %p133
        %p257 = pneg %p130
        %p258 = pneg %p159
        %p259 = pneg %p156
        %s260 = sand.u32 %s146, 1
        %s261 = scalar_lea.sflag [#allocation8], %s260
        %s262 = sand.u32 %s146, 1
        %s263 = smul.addr %s262, 8
        %s264 = scalar_lea.vmem [#allocation7], %s263
        %p265 = scmp.lt.s32.totalorder %s22, 1
        %s266 = scalar_select %p265, %s22, 1
        %s267 = smul.addr %s266, 16
        %s268 = smul.addr %s267, 8
        %s269 = scalar_lea.vmem %s0, %s268
        %p270 = scmp.lt.s32.totalorder %s22, 1
        %s271 = scalar_select %p270, %s22, 1
        %s272 = smul.addr %s271, 4
        %s273 = scalar_lea.vmem %s1, %s272
        %p274 = scmp.lt.s32.totalorder %s22, 1
        %s275 = scalar_select %p274, %s22, 1
        %p276 = scmp.lt.s32.totalorder %s23, 1
        %s277 = scalar_select %p276, %s23, 1
        %s278 = smul.addr %s275, 2
        %s279 = sadd.s32 %s277, %s278
        %s280 = smul.addr %s279, 2
        %s281 = scalar_lea.vmem %s2, %s280
        %s282 = smul.u32 16, %s23
        %p283 = scmp.lt.s32.totalorder %s22, 1
        %s284 = scalar_select %p283, %s22, 1
        %p285 = scmp.lt.s32.totalorder %s282, 31
        %s286 = scalar_select %p285, %s282, 31
        %s287 = smul.addr %s284, 32
        %s288 = sadd.s32 %s286, %s287
        %s289 = smul.addr %s288, 4
        %s290 = scalar_lea.vmem %s3, %s289
        %s291 = smul.u32 16, %s23
        %p293 = scmp.eq.s32.totalorder %s23, 0
        // Predicated region
        $region37: #{_matcher_device_fn.3} parent=35 // pred_check
          %p294 = pneg %p293
        $region38: #{_matcher_device_fn.3} parent=35 // pred_check_branch
          %296 = sbr.rel (%p294) target = $region40
        $region39: #{_matcher_device_fn.3} parent=35 // pred_region
          %297 = vst [vmem:[#allocation2] sm:$0xf] 0.0
          %298 = vst [vmem:[#allocation3] sm:$0xf] 0.0
          %299 = vst [vmem:[#allocation4] sm:$0x1] 0.0
          %300 = vst [vmem:[#allocation5] sm:$0x1] 0.0
          %vm301 = vcmask 3072
          %302 = vst.msk [vmem:[#allocation6] sm:$0xf] %vm301, 0.0
        $region40: #{_matcher_device_fn.3} parent=35 // pred_fallthru
          _
        %v303 = vld [vmem:[%s290] sm:$0xf]
        %v304 = vld [vmem:[%s290 + $0x4] sm:$0xf]
        %v305 = vld [vmem:[%s290 + $0x8] sm:$0xf]
        %v306 = vld [vmem:[%s290 + $0xc] sm:$0xf]
        %v307 = vld [vmem:[%s290 + $0x10] sm:$0xf]
        %v308 = vld [vmem:[%s290 + $0x14] sm:$0xf]
        %v309 = vld [vmem:[%s290 + $0x18] sm:$0xf]
        %v310 = vld [vmem:[%s290 + $0x1c] sm:$0xf]
        %v311 = vld [vmem:[%s290 + $0x20] sm:$0xf]
        %v312 = vld [vmem:[%s290 + $0x24] sm:$0xf]
        %v313 = vld [vmem:[%s290 + $0x28] sm:$0xf]
        %v314 = vld [vmem:[%s290 + $0x2c] sm:$0xf]
        %v315 = vld [vmem:[%s290 + $0x30] sm:$0xf]
        %v316 = vld [vmem:[%s290 + $0x34] sm:$0xf]
        %v317 = vld [vmem:[%s290 + $0x38] sm:$0xf]
        %v318 = vld [vmem:[%s290 + $0x3c] sm:$0xf]
        %v319 = vld [vmem:[%s281] sm:$0x3]
        %v320 = vunpack.c.l.bf16 %v303
        %v321 = vunpack.c.l.bf16 %v304
        %v322 = vunpack.c.l.bf16 %v305
        %v323 = vunpack.c.l.bf16 %v306
        %v324 = vunpack.c.l.bf16 %v307
        %v325 = vunpack.c.l.bf16 %v308
        %v326 = vunpack.c.l.bf16 %v309
        %v327 = vunpack.c.l.bf16 %v310
        %v328 = vunpack.c.l.bf16 %v311
        %v329 = vunpack.c.l.bf16 %v312
        %v330 = vunpack.c.l.bf16 %v313
        %v331 = vunpack.c.l.bf16 %v314
        %v332 = vunpack.c.l.bf16 %v315
        %v333 = vunpack.c.l.bf16 %v316
        %v334 = vunpack.c.l.bf16 %v317
        %v335 = vunpack.c.l.bf16 %v318
        %v336 = vxor.u32 %v320, 2147483648
        %v337 = vxor.u32 %v321, 2147483648
        %v338 = vxor.u32 %v322, 2147483648
        %v339 = vxor.u32 %v323, 2147483648
        %v340 = vxor.u32 %v324, 2147483648
        %v341 = vxor.u32 %v325, 2147483648
        %v342 = vxor.u32 %v326, 2147483648
        %v343 = vxor.u32 %v327, 2147483648
        %v344 = vxor.u32 %v328, 2147483648
        %v345 = vxor.u32 %v329, 2147483648
        %v346 = vxor.u32 %v330, 2147483648
        %v347 = vxor.u32 %v331, 2147483648
        %v348 = vxor.u32 %v332, 2147483648
        %v349 = vxor.u32 %v333, 2147483648
        %v350 = vxor.u32 %v334, 2147483648
        %v351 = vxor.u32 %v335, 2147483648
        %v352 = vmul.f32 %v336, 1.442695
        %v353 = vpow.pop %v352
        %v354 = vmul.f32 %v337, 1.442695
        %v355 = vpow.pop %v354
        %v356 = vmul.f32 %v338, 1.442695
        %v357 = vpow.pop %v356
        %v358 = vmul.f32 %v339, 1.442695
        %v359 = vpow.pop %v358
        %v360 = vmul.f32 %v340, 1.442695
        %v361 = vpow.pop %v360
        %v362 = vmul.f32 %v341, 1.442695
        %v363 = vpow.pop %v362
        %v364 = vmul.f32 %v342, 1.442695
        %v365 = vpow.pop %v364
        %v366 = vmul.f32 %v343, 1.442695
        %v367 = vpow.pop %v366
        %v368 = vmul.f32 %v344, 1.442695
        %v369 = vpow.pop %v368
        %v370 = vmul.f32 %v345, 1.442695
        %v371 = vpow.pop %v370
        %v372 = vmul.f32 %v346, 1.442695
        %v373 = vpow.pop %v372
        %v374 = vmul.f32 %v347, 1.442695
        %v375 = vpow.pop %v374
        %v376 = vmul.f32 %v348, 1.442695
        %v377 = vpow.pop %v376
        %v378 = vmul.f32 %v349, 1.442695
        %v379 = vpow.pop %v378
        %v380 = vmul.f32 %v350, 1.442695
        %v381 = vpow.pop %v380
        %v382 = vmul.f32 %v351, 1.442695
        %v383 = vpow.pop %v382
        %v384 = vadd.f32 %v353, 1.0
        %v385 = vadd.f32 %v355, 1.0
        %v386 = vadd.f32 %v357, 1.0
        %v387 = vadd.f32 %v359, 1.0
        %v388 = vadd.f32 %v361, 1.0
        %v389 = vadd.f32 %v363, 1.0
        %v390 = vadd.f32 %v365, 1.0
        %v391 = vadd.f32 %v367, 1.0
        %v392 = vadd.f32 %v369, 1.0
        %v393 = vadd.f32 %v371, 1.0
        %v394 = vadd.f32 %v373, 1.0
        %v395 = vadd.f32 %v375, 1.0
        %v396 = vadd.f32 %v377, 1.0
        %v397 = vadd.f32 %v379, 1.0
        %v398 = vadd.f32 %v381, 1.0
        %v399 = vadd.f32 %v383, 1.0
        %v400 = vrcp.pop %v384
        %v401 = vmul.f32 1.0, %v400
        %v402 = vrcp.pop %v385
        %v403 = vmul.f32 1.0, %v402
        %v404 = vrcp.pop %v386
        %v405 = vmul.f32 1.0, %v404
        %v406 = vrcp.pop %v387
        %v407 = vmul.f32 1.0, %v406
        %v408 = vrcp.pop %v388
        %v409 = vmul.f32 1.0, %v408
        %v410 = vrcp.pop %v389
        %v411 = vmul.f32 1.0, %v410
        %v412 = vrcp.pop %v390
        %v413 = vmul.f32 1.0, %v412
        %v414 = vrcp.pop %v391
        %v415 = vmul.f32 1.0, %v414
        %v416 = vrcp.pop %v392
        %v417 = vmul.f32 1.0, %v416
        %v418 = vrcp.pop %v393
        %v419 = vmul.f32 1.0, %v418
        %v420 = vrcp.pop %v394
        %v421 = vmul.f32 1.0, %v420
        %v422 = vrcp.pop %v395
        %v423 = vmul.f32 1.0, %v422
        %v424 = vrcp.pop %v396
        %v425 = vmul.f32 1.0, %v424
        %v426 = vrcp.pop %v397
        %v427 = vmul.f32 1.0, %v426
        %v428 = vrcp.pop %v398
        %v429 = vmul.f32 1.0, %v428
        %v430 = vrcp.pop %v399
        %v431 = vmul.f32 1.0, %v430
        %v432 = vmax.f32 %v320, 0.0
        %v433 = vmax.f32 %v321, 0.0
        %v434 = vmax.f32 %v322, 0.0
        %v435 = vmax.f32 %v323, 0.0
        %v436 = vmax.f32 %v324, 0.0
        %v437 = vmax.f32 %v325, 0.0
        %v438 = vmax.f32 %v326, 0.0
        %v439 = vmax.f32 %v327, 0.0
        %v440 = vmax.f32 %v328, 0.0
        %v441 = vmax.f32 %v329, 0.0
        %v442 = vmax.f32 %v330, 0.0
        %v443 = vmax.f32 %v331, 0.0
        %v444 = vmax.f32 %v332, 0.0
        %v445 = vmax.f32 %v333, 0.0
        %v446 = vmax.f32 %v334, 0.0
        %v447 = vmax.f32 %v335, 0.0
        %v448 = vand.u32 2147483647, %v320
        %v449 = vand.u32 2147483647, %v321
        %v450 = vand.u32 2147483647, %v322
        %v451 = vand.u32 2147483647, %v323
        %v452 = vand.u32 2147483647, %v324
        %v453 = vand.u32 2147483647, %v325
        %v454 = vand.u32 2147483647, %v326
        %v455 = vand.u32 2147483647, %v327
        %v456 = vand.u32 2147483647, %v328
        %v457 = vand.u32 2147483647, %v329
        %v458 = vand.u32 2147483647, %v330
        %v459 = vand.u32 2147483647, %v331
        %v460 = vand.u32 2147483647, %v332
        %v461 = vand.u32 2147483647, %v333
        %v462 = vand.u32 2147483647, %v334
        %v463 = vand.u32 2147483647, %v335
        %v464 = vsub.f32 0.0, %v448
        %v465 = vsub.f32 0.0, %v449
        %v466 = vsub.f32 0.0, %v450
        %v467 = vsub.f32 0.0, %v451
        %v468 = vsub.f32 0.0, %v452
        %v469 = vsub.f32 0.0, %v453
        %v470 = vsub.f32 0.0, %v454
        %v471 = vsub.f32 0.0, %v455
        %v472 = vsub.f32 0.0, %v456
        %v473 = vsub.f32 0.0, %v457
        %v474 = vsub.f32 0.0, %v458
        %v475 = vsub.f32 0.0, %v459
        %v476 = vsub.f32 0.0, %v460
        %v477 = vsub.f32 0.0, %v461
        %v478 = vsub.f32 0.0, %v462
        %v479 = vsub.f32 0.0, %v463
        %v480 = vmul.f32 %v464, 1.442695
        %v481 = vpow.pop %v480
        %v482 = vmul.f32 %v465, 1.442695
        %v483 = vpow.pop %v482
        %v484 = vmul.f32 %v466, 1.442695
        %v485 = vpow.pop %v484
        %v486 = vmul.f32 %v467, 1.442695
        %v487 = vpow.pop %v486
        %v488 = vmul.f32 %v468, 1.442695
        %v489 = vpow.pop %v488
        %v490 = vmul.f32 %v469, 1.442695
        %v491 = vpow.pop %v490
        %v492 = vmul.f32 %v470, 1.442695
        %v493 = vpow.pop %v492
        %v494 = vmul.f32 %v471, 1.442695
        %v495 = vpow.pop %v494
        %v496 = vmul.f32 %v472, 1.442695
        %v497 = vpow.pop %v496
        %v498 = vmul.f32 %v473, 1.442695
        %v499 = vpow.pop %v498
        %v500 = vmul.f32 %v474, 1.442695
        %v501 = vpow.pop %v500
        %v502 = vmul.f32 %v475, 1.442695
        %v503 = vpow.pop %v502
        %v504 = vmul.f32 %v476, 1.442695
        %v505 = vpow.pop %v504
        %v506 = vmul.f32 %v477, 1.442695
        %v507 = vpow.pop %v506
        %v508 = vmul.f32 %v478, 1.442695
        %v509 = vpow.pop %v508
        %v510 = vmul.f32 %v479, 1.442695
        %v511 = vpow.pop %v510
        %v512 = vadd.f32 %v481, 1.0
        %v513 = vlog2.pop %v512
        %v514 = vmul.f32 %v513, 0.6931472
        %v515 = vmul.f32 -0.5, %v481
        %v516 = vadd.f32 %v515, 1.0
        %v517 = vmul.f32 %v516, %v481
        %v518 = vand.u32 2147483647, %v481
        %vm519 = vcmp.lt.f32.partialorder %v518, 0.0004427343
        %v520 = vsel %vm519, %v517, %v514
        %v521 = vadd.f32 %v483, 1.0
        %v522 = vlog2.pop %v521
        %v523 = vmul.f32 %v522, 0.6931472
        %v524 = vmul.f32 -0.5, %v483
        %v525 = vadd.f32 %v524, 1.0
        %v526 = vmul.f32 %v525, %v483
        %v527 = vand.u32 2147483647, %v483
        %vm528 = vcmp.lt.f32.partialorder %v527, 0.0004427343
        %v529 = vsel %vm528, %v526, %v523
        %v530 = vadd.f32 %v485, 1.0
        %v531 = vlog2.pop %v530
        %v532 = vmul.f32 %v531, 0.6931472
        %v533 = vmul.f32 -0.5, %v485
        %v534 = vadd.f32 %v533, 1.0
        %v535 = vmul.f32 %v534, %v485
        %v536 = vand.u32 2147483647, %v485
        %vm537 = vcmp.lt.f32.partialorder %v536, 0.0004427343
        %v538 = vsel %vm537, %v535, %v532
        %v539 = vadd.f32 %v487, 1.0
        %v540 = vlog2.pop %v539
        %v541 = vmul.f32 %v540, 0.6931472
        %v542 = vmul.f32 -0.5, %v487
        %v543 = vadd.f32 %v542, 1.0
        %v544 = vmul.f32 %v543, %v487
        %v545 = vand.u32 2147483647, %v487
        %vm546 = vcmp.lt.f32.partialorder %v545, 0.0004427343
        %v547 = vsel %vm546, %v544, %v541
        %v548 = vadd.f32 %v489, 1.0
        %v549 = vlog2.pop %v548
        %v550 = vmul.f32 %v549, 0.6931472
        %v551 = vmul.f32 -0.5, %v489
        %v552 = vadd.f32 %v551, 1.0
        %v553 = vmul.f32 %v552, %v489
        %v554 = vand.u32 2147483647, %v489
        %vm555 = vcmp.lt.f32.partialorder %v554, 0.0004427343
        %v556 = vsel %vm555, %v553, %v550
        %v557 = vadd.f32 %v491, 1.0
        %v558 = vlog2.pop %v557
        %v559 = vmul.f32 %v558, 0.6931472
        %v560 = vmul.f32 -0.5, %v491
        %v561 = vadd.f32 %v560, 1.0
        %v562 = vmul.f32 %v561, %v491
        %v563 = vand.u32 2147483647, %v491
        %vm564 = vcmp.lt.f32.partialorder %v563, 0.0004427343
        %v565 = vsel %vm564, %v562, %v559
        %v566 = vadd.f32 %v493, 1.0
        %v567 = vlog2.pop %v566
        %v568 = vmul.f32 %v567, 0.6931472
        %v569 = vmul.f32 -0.5, %v493
        %v570 = vadd.f32 %v569, 1.0
        %v571 = vmul.f32 %v570, %v493
        %v572 = vand.u32 2147483647, %v493
        %vm573 = vcmp.lt.f32.partialorder %v572, 0.0004427343
        %v574 = vsel %vm573, %v571, %v568
        %v575 = vadd.f32 %v495, 1.0
        %v576 = vlog2.pop %v575
        %v577 = vmul.f32 %v576, 0.6931472
        %v578 = vmul.f32 -0.5, %v495
        %v579 = vadd.f32 %v578, 1.0
        %v580 = vmul.f32 %v579, %v495
        %v581 = vand.u32 2147483647, %v495
        %vm582 = vcmp.lt.f32.partialorder %v581, 0.0004427343
        %v583 = vsel %vm582, %v580, %v577
        %v584 = vadd.f32 %v497, 1.0
        %v585 = vlog2.pop %v584
        %v586 = vmul.f32 %v585, 0.6931472
        %v587 = vmul.f32 -0.5, %v497
        %v588 = vadd.f32 %v587, 1.0
        %v589 = vmul.f32 %v588, %v497
        %v590 = vand.u32 2147483647, %v497
        %vm591 = vcmp.lt.f32.partialorder %v590, 0.0004427343
        %v592 = vsel %vm591, %v589, %v586
        %v593 = vadd.f32 %v499, 1.0
        %v594 = vlog2.pop %v593
        %v595 = vmul.f32 %v594, 0.6931472
        %v596 = vmul.f32 -0.5, %v499
        %v597 = vadd.f32 %v596, 1.0
        %v598 = vmul.f32 %v597, %v499
        %v599 = vand.u32 2147483647, %v499
        %vm600 = vcmp.lt.f32.partialorder %v599, 0.0004427343
        %v601 = vsel %vm600, %v598, %v595
        %v602 = vadd.f32 %v501, 1.0
        %v603 = vlog2.pop %v602
        %v604 = vmul.f32 %v603, 0.6931472
        %v605 = vmul.f32 -0.5, %v501
        %v606 = vadd.f32 %v605, 1.0
        %v607 = vmul.f32 %v606, %v501
        %v608 = vand.u32 2147483647, %v501
        %vm609 = vcmp.lt.f32.partialorder %v608, 0.0004427343
        %v610 = vsel %vm609, %v607, %v604
        %v611 = vadd.f32 %v503, 1.0
        %v612 = vlog2.pop %v611
        %v613 = vmul.f32 %v612, 0.6931472
        %v614 = vmul.f32 -0.5, %v503
        %v615 = vadd.f32 %v614, 1.0
        %v616 = vmul.f32 %v615, %v503
        %v617 = vand.u32 2147483647, %v503
        %vm618 = vcmp.lt.f32.partialorder %v617, 0.0004427343
        %v619 = vsel %vm618, %v616, %v613
        %v620 = vadd.f32 %v505, 1.0
        %v621 = vlog2.pop %v620
        %v622 = vmul.f32 %v621, 0.6931472
        %v623 = vmul.f32 -0.5, %v505
        %v624 = vadd.f32 %v623, 1.0
        %v625 = vmul.f32 %v624, %v505
        %v626 = vand.u32 2147483647, %v505
        %vm627 = vcmp.lt.f32.partialorder %v626, 0.0004427343
        %v628 = vsel %vm627, %v625, %v622
        %v629 = vadd.f32 %v507, 1.0
        %v630 = vlog2.pop %v629
        %v631 = vmul.f32 %v630, 0.6931472
        %v632 = vmul.f32 -0.5, %v507
        %v633 = vadd.f32 %v632, 1.0
        %v634 = vmul.f32 %v633, %v507
        %v635 = vand.u32 2147483647, %v507
        %vm636 = vcmp.lt.f32.partialorder %v635, 0.0004427343
        %v637 = vsel %vm636, %v634, %v631
        %v638 = vadd.f32 %v509, 1.0
        %v639 = vlog2.pop %v638
        %v640 = vmul.f32 %v639, 0.6931472
        %v641 = vmul.f32 -0.5, %v509
        %v642 = vadd.f32 %v641, 1.0
        %v643 = vmul.f32 %v642, %v509
        %v644 = vand.u32 2147483647, %v509
        %vm645 = vcmp.lt.f32.partialorder %v644, 0.0004427343
        %v646 = vsel %vm645, %v643, %v640
        %v647 = vadd.f32 %v511, 1.0
        %v648 = vlog2.pop %v647
        %v649 = vmul.f32 %v648, 0.6931472
        %v650 = vmul.f32 -0.5, %v511
        %v651 = vadd.f32 %v650, 1.0
        %v652 = vmul.f32 %v651, %v511
        %v653 = vand.u32 2147483647, %v511
        %vm654 = vcmp.lt.f32.partialorder %v653, 0.0004427343
        %v655 = vsel %vm654, %v652, %v649
        %v656 = vadd.f32 %v432, %v520
        %v657 = vadd.f32 %v433, %v529
        %v658 = vadd.f32 %v434, %v538
        %v659 = vadd.f32 %v435, %v547
        %v660 = vadd.f32 %v436, %v556
        %v661 = vadd.f32 %v437, %v565
        %v662 = vadd.f32 %v438, %v574
        %v663 = vadd.f32 %v439, %v583
        %v664 = vadd.f32 %v440, %v592
        %v665 = vadd.f32 %v441, %v601
        %v666 = vadd.f32 %v442, %v610
        %v667 = vadd.f32 %v443, %v619
        %v668 = vadd.f32 %v444, %v628
        %v669 = vadd.f32 %v445, %v637
        %v670 = vadd.f32 %v446, %v646
        %v671 = vadd.f32 %v447, %v655
        %v672 = vld [vmem:[#allocation4] sm:$0x1]
        %v673 = vadd.f32 %v656, %v657
        %v674 = vadd.f32 %v673, %v658
        %v675 = vadd.f32 %v674, %v659
        %v676 = vadd.f32 %v675, %v660
        %v677 = vadd.f32 %v676, %v661
        %v678 = vadd.f32 %v677, %v662
        %v679 = vadd.f32 %v678, %v663
        %v680 = vadd.f32 %v679, %v664
        %v681 = vadd.f32 %v680, %v665
        %v682 = vadd.f32 %v681, %v666
        %v683 = vadd.f32 %v682, %v667
        %v684 = vadd.f32 %v683, %v668
        %v685 = vadd.f32 %v684, %v669
        %v686 = vadd.f32 %v685, %v670
        %v687 = vadd.f32 %v686, %v671
        %v688 = vrot.slane %v687, 4
        %v689 = vadd.f32 %v687, %v688
        %v690 = vrot.slane %v689, 2
        %v691 = vadd.f32 %v689, %v690
        %v692 = vrot.slane %v691, 1
        %v693 = vadd.f32 %v691, %v692
        %v694 = vadd.f32 %v672, %v693
        %695 = vst [vmem:[#allocation4] sm:$0x1] %v694
        %v696 = vld [vmem:[#allocation5] sm:$0x1]
        %v697 = vadd.f32 %v401, %v403
        %v698 = vadd.f32 %v697, %v405
        %v699 = vadd.f32 %v698, %v407
        %v700 = vadd.f32 %v699, %v409
        %v701 = vadd.f32 %v700, %v411
        %v702 = vadd.f32 %v701, %v413
        %v703 = vadd.f32 %v702, %v415
        %v704 = vadd.f32 %v703, %v417
        %v705 = vadd.f32 %v704, %v419
        %v706 = vadd.f32 %v705, %v421
        %v707 = vadd.f32 %v706, %v423
        %v708 = vadd.f32 %v707, %v425
        %v709 = vadd.f32 %v708, %v427
        %v710 = vadd.f32 %v709, %v429
        %v711 = vadd.f32 %v710, %v431
        %v712 = vrot.slane %v711, 4
        %v713 = vadd.f32 %v711, %v712
        %v714 = vrot.slane %v713, 2
        %v715 = vadd.f32 %v713, %v714
        %v716 = vrot.slane %v715, 1
        %v717 = vadd.f32 %v715, %v716
        %v718 = vadd.f32 %v696, %v717
        %719 = vst [vmem:[#allocation5] sm:$0x1] %v718
        %v720 = vld [vmem:[#allocation6] sm:$0xf]
        %v721 = vunpack.c.l.bf16 %v319
        %vm722 = vcmask 1043456
        %v723 = vsel %vm722, %v721, 0.0
        %724 = vadd.xlane.f32.xlu0 %v723
        %v725 = vpop.xlane.xlu0 %724
        %v726 = vadd.f32 %v720, %v725
        %vm727 = vcmask 3072
        %728 = vst.msk [vmem:[#allocation6] sm:$0xf] %vm727, %v726
        %v729 = vsub.bf16 0, %v303
        %v730 = vsub.bf16 0, %v304
        %v731 = vsub.bf16 0, %v305
        %v732 = vsub.bf16 0, %v306
        %v733 = vsub.bf16 0, %v307
        %v734 = vsub.bf16 0, %v308
        %v735 = vsub.bf16 0, %v309
        %v736 = vsub.bf16 0, %v310
        %v737 = vsub.bf16 0, %v311
        %v738 = vsub.bf16 0, %v312
        %v739 = vsub.bf16 0, %v313
        %v740 = vsub.bf16 0, %v314
        %v741 = vsub.bf16 0, %v315
        %v742 = vsub.bf16 0, %v316
        %v743 = vsub.bf16 0, %v317
        %v744 = vsub.bf16 0, %v318
        %v745 = vpack.c.bf16 %v403, %v401
        %v746 = vpack.c.bf16 %v407, %v405
        %v747 = vpack.c.bf16 %v411, %v409
        %v748 = vpack.c.bf16 %v415, %v413
        %v749 = vpack.c.bf16 %v419, %v417
        %v750 = vpack.c.bf16 %v423, %v421
        %v751 = vpack.c.bf16 %v427, %v425
        %v752 = vpack.c.bf16 %v431, %v429
        %v769 = vunpack.c.l.b16 %v729
        %v770 = vunpack.c.l.b16 %v730
        %v771 = vunpack.c.l.b16 %v731
        %v772 = vunpack.c.l.b16 %v732
        %v773 = vunpack.c.l.b16 %v733
        %v774 = vunpack.c.l.b16 %v734
        %v775 = vunpack.c.l.b16 %v735
        %v776 = vunpack.c.l.b16 %v736
        %v777 = vunpack.c.l.b16 %v737
        %v778 = vunpack.c.l.b16 %v738
        %v779 = vunpack.c.l.b16 %v739
        %v780 = vunpack.c.l.b16 %v740
        %v781 = vunpack.c.l.b16 %v741
        %v782 = vunpack.c.l.b16 %v742
        %v783 = vunpack.c.l.b16 %v743
        %v784 = vunpack.c.l.b16 %v744
        %v785 = vpack.c.b16 %v770, %v769
        %v786 = vpack.c.b16 %v772, %v771
        %v787 = vpack.c.b16 %v774, %v773
        %v788 = vpack.c.b16 %v776, %v775
        %v789 = vpack.c.b16 %v778, %v777
        %v790 = vpack.c.b16 %v780, %v779
        %v791 = vpack.c.b16 %v782, %v781
        %v792 = vpack.c.b16 %v784, %v783
        %801 = vmatprep.subr.bf16.mxu0 %v745
        %802 = vmatpush1.bf16.msra.mxu0 %v785
        %803 = vmatprep.subr.bf16.mxu0 %v746
        %804 = vmatpush1.bf16.msra.mxu0 %v786
        %805 = vmatprep.subr.bf16.mxu0 %v747
        %806 = vmatpush1.bf16.msra.mxu0 %v787
        %807 = vmatprep.subr.bf16.mxu0 %v748
        %808 = vmatpush1.bf16.msra.mxu0 %v788
        %809 = vmatprep.subr.bf16.mxu0 %v749
        %810 = vmatpush1.bf16.msra.mxu0 %v789
        %811 = vmatprep.subr.bf16.mxu0 %v750
        %812 = vmatpush1.bf16.msra.mxu0 %v790
        %813 = vmatprep.subr.bf16.mxu0 %v751
        %814 = vmatpush1.bf16.msra.mxu0 %v791
        %815 = vmatprep.subr.bf16.mxu0 %v752
        %816 = vmatpush1.bf16.msra.mxu0 %v792
        %817 = vmatprep.subr.bf16.mxu0 0
        %818 = vmatpush1.bf16.msra.mxu0 0
        %819 = vmatprep.subr.bf16.mxu0 0
        %820 = vmatpush1.bf16.msra.mxu0 0
        %821 = vmatprep.subr.bf16.mxu0 0
        %822 = vmatpush1.bf16.msra.mxu0 0
        %823 = vmatprep.subr.bf16.mxu0 0
        %824 = vmatpush1.bf16.msra.mxu0 0
        %825 = vmatprep.subr.bf16.mxu0 0
        %826 = vmatpush1.bf16.msra.mxu0 0
        %827 = vmatprep.subr.bf16.mxu0 0
        %828 = vmatpush1.bf16.msra.mxu0 0
        %829 = vmatprep.subr.bf16.mxu0 0
        %830 = vmatpush1.bf16.msra.mxu0 0
        %831 = vmatprep.subr.bf16.mxu0 0
        %832 = vmatpush1.bf16.msra.mxu0 0
        %833 = vmatprep.mubr.bf16.mxu0 0
        %834 = vmatmul.mubr.bf16.gmra.mrb[0].mxu0 %v319
        %v835 = vpop.f32.mrb[0].mxu0
        %v836 = vadd.f32 0.0, %v835
        %v837 = vpop.f32.mrb[0].mxu0
        %v838 = vadd.f32 0.0, %v837
        %v839 = vpop.f32.mrb[0].mxu0
        %v840 = vpop.f32.mrb[0].mxu0
        %841 = vdwg.mxu0
        %v842 = vld [vmem:[#allocation2] sm:$0xf]
        %v843 = vadd.f32 %v842, %v836
        %844 = vst [vmem:[#allocation2] sm:$0xf] %v843
        %v845 = vld [vmem:[#allocation3] sm:$0xf]
        %v846 = vadd.f32 %v845, %v838
        %847 = vst [vmem:[#allocation3] sm:$0xf] %v846
        %p848 = scmp.eq.s32.totalorder %s23, 1
        // Predicated region
        $region41: #{_matcher_device_fn.3} parent=35 // pred_check
          %p849 = pneg %p848
        $region42: #{_matcher_device_fn.3} parent=35 // pred_check_branch
          %851 = sbr.rel (%p849) target = $region44
        $region43: #{_matcher_device_fn.3} parent=35 // pred_region
          %v852 = vld [vmem:[#allocation2] sm:$0xf]
          %v853 = vld [vmem:[#allocation4] sm:$0x1]
          %v855 = vlaneseq
          %v856 = vshrl.u32 %v855, 7
          %v857 = vsub.s32 0, %v856
          %v858 = vrot.slane %v853, %v857
          %v860 = vadd.f32 %v852, %v858
          %v861 = vmul.f32 %v860, 0.00390625
          %v862 = vld [vmem:[#allocation5] sm:$0x1]
          %v863 = vld [vmem:[#allocation6] sm:$0xf]
          %v865 = vlaneseq
          %v866 = vshrl.u32 %v865, 7
          %v867 = vsub.s32 0, %v866
          %v868 = vrot.slane %v862, %v867
          %871 = vset.pattern.permute.xlu0 0
          %872 = vperm.xlu0 %871, %v863
          %v873 = vpop.permute.xlu0 %872
          %v875 = vadd.f32 %v868, %v873
          %v876 = vld [vmem:[#allocation3] sm:$0xf]
          %v877 = vmul.f32 %v876, 2.0
          %v878 = vadd.f32 %v877, 1.0
          %v879 = vadd.f32 %v875, 1.0
          %v880 = vrcp.pop %v879
          %v881 = vmul.f32 %v878, %v880
          %v882 = vsub.f32 1.0, %v881
          %v883 = vsub.f32 1.0, %v882
          %v884 = vld [vmem:[%s269] sm:$0xff]
          %v885 = vld [vmem:[%s269 + $0x8] sm:$0xff]
          %v886 = vld [vmem:[%s269 + $0x10] sm:$0xff]
          %v887 = vld [vmem:[%s269 + $0x18] sm:$0xff]
          %v888 = vld [vmem:[%s269 + $0x20] sm:$0xff]
          %v889 = vld [vmem:[%s269 + $0x28] sm:$0xff]
          %v890 = vld [vmem:[%s269 + $0x30] sm:$0xff]
          %v891 = vld [vmem:[%s269 + $0x38] sm:$0xff]
          %v892 = vld [vmem:[%s269 + $0x40] sm:$0xff]
          %v893 = vld [vmem:[%s269 + $0x48] sm:$0xff]
          %v894 = vld [vmem:[%s269 + $0x50] sm:$0xff]
          %v895 = vld [vmem:[%s269 + $0x58] sm:$0xff]
          %v896 = vld [vmem:[%s269 + $0x60] sm:$0xff]
          %v897 = vld [vmem:[%s269 + $0x68] sm:$0xff]
          %v898 = vld [vmem:[%s269 + $0x70] sm:$0xff]
          %v899 = vld [vmem:[%s269 + $0x78] sm:$0xff]
          %v900 = vld [vmem:[%s273] sm:$0xf]
          %vm901 = vcmask 39936
          %v902 = vsel %vm901, %v884, -inf
          %903 = vmax.xlane.f32.xlu0 %v902
          %v904 = vpop.xlane.xlu0 %903
          %v905 = vsel %vm901, %v885, -inf
          %906 = vmax.xlane.f32.xlu0 %v905
          %v907 = vpop.xlane.xlu0 %906
          %v908 = vsel %vm901, %v886, -inf
          %909 = vmax.xlane.f32.xlu0 %v908
          %v910 = vpop.xlane.xlu0 %909
          %v911 = vsel %vm901, %v887, -inf
          %912 = vmax.xlane.f32.xlu0 %v911
          %v913 = vpop.xlane.xlu0 %912
          %v914 = vsel %vm901, %v888, -inf
          %915 = vmax.xlane.f32.xlu0 %v914
          %v916 = vpop.xlane.xlu0 %915
          %v917 = vsel %vm901, %v889, -inf
          %918 = vmax.xlane.f32.xlu0 %v917
          %v919 = vpop.xlane.xlu0 %918
          %v920 = vsel %vm901, %v890, -inf
          %921 = vmax.xlane.f32.xlu0 %v920
          %v922 = vpop.xlane.xlu0 %921
          %v923 = vsel %vm901, %v891, -inf
          %924 = vmax.xlane.f32.xlu0 %v923
          %v925 = vpop.xlane.xlu0 %924
          %v926 = vsel %vm901, %v892, -inf
          %927 = vmax.xlane.f32.xlu0 %v926
          %v928 = vpop.xlane.xlu0 %927
          %v929 = vsel %vm901, %v893, -inf
          %930 = vmax.xlane.f32.xlu0 %v929
          %v931 = vpop.xlane.xlu0 %930
          %v932 = vsel %vm901, %v894, -inf
          %933 = vmax.xlane.f32.xlu0 %v932
          %v934 = vpop.xlane.xlu0 %933
          %v935 = vsel %vm901, %v895, -inf
          %936 = vmax.xlane.f32.xlu0 %v935
          %v937 = vpop.xlane.xlu0 %936
          %v938 = vsel %vm901, %v896, -inf
          %939 = vmax.xlane.f32.xlu0 %v938
          %v940 = vpop.xlane.xlu0 %939
          %v941 = vsel %vm901, %v897, -inf
          %942 = vmax.xlane.f32.xlu0 %v941
          %v943 = vpop.xlane.xlu0 %942
          %v944 = vsel %vm901, %v898, -inf
          %945 = vmax.xlane.f32.xlu0 %v944
          %v946 = vpop.xlane.xlu0 %945
          %v947 = vsel %vm901, %v899, -inf
          %948 = vmax.xlane.f32.xlu0 %v947
          %v949 = vpop.xlane.xlu0 %948
          %v950 = vsub.f32 %v884, %v904
          %v951 = vsub.f32 %v885, %v907
          %v952 = vsub.f32 %v886, %v910
          %v953 = vsub.f32 %v887, %v913
          %v954 = vsub.f32 %v888, %v916
          %v955 = vsub.f32 %v889, %v919
          %v956 = vsub.f32 %v890, %v922
          %v957 = vsub.f32 %v891, %v925
          %v958 = vsub.f32 %v892, %v928
          %v959 = vsub.f32 %v893, %v931
          %v960 = vsub.f32 %v894, %v934
          %v961 = vsub.f32 %v895, %v937
          %v962 = vsub.f32 %v896, %v940
          %v963 = vsub.f32 %v897, %v943
          %v964 = vsub.f32 %v898, %v946
          %v965 = vsub.f32 %v899, %v949
          %v966 = vmul.f32 %v950, 1.442695
          %v967 = vpow.pop %v966
          %v968 = vmul.f32 %v951, 1.442695
          %v969 = vpow.pop %v968
          %v970 = vmul.f32 %v952, 1.442695
          %v971 = vpow.pop %v970
          %v972 = vmul.f32 %v953, 1.442695
          %v973 = vpow.pop %v972
          %v974 = vmul.f32 %v954, 1.442695
          %v975 = vpow.pop %v974
          %v976 = vmul.f32 %v955, 1.442695
          %v977 = vpow.pop %v976
          %v978 = vmul.f32 %v956, 1.442695
          %v979 = vpow.pop %v978
          %v980 = vmul.f32 %v957, 1.442695
          %v981 = vpow.pop %v980
          %v982 = vmul.f32 %v958, 1.442695
          %v983 = vpow.pop %v982
          %v984 = vmul.f32 %v959, 1.442695
          %v985 = vpow.pop %v984
          %v986 = vmul.f32 %v960, 1.442695
          %v987 = vpow.pop %v986
          %v988 = vmul.f32 %v961, 1.442695
          %v989 = vpow.pop %v988
          %v990 = vmul.f32 %v962, 1.442695
          %v991 = vpow.pop %v990
          %v992 = vmul.f32 %v963, 1.442695
          %v993 = vpow.pop %v992
          %v994 = vmul.f32 %v964, 1.442695
          %v995 = vpow.pop %v994
          %v996 = vmul.f32 %v965, 1.442695
          %v997 = vpow.pop %v996
          %v998 = vsel %vm901, %v967, 0.0
          %999 = vadd.xlane.f32.xlu0 %v998
          %v1000 = vpop.xlane.xlu0 %999
          %v1001 = vsel %vm901, %v969, 0.0
          %1002 = vadd.xlane.f32.xlu0 %v1001
          %v1003 = vpop.xlane.xlu0 %1002
          %v1004 = vsel %vm901, %v971, 0.0
          %1005 = vadd.xlane.f32.xlu0 %v1004
          %v1006 = vpop.xlane.xlu0 %1005
          %v1007 = vsel %vm901, %v973, 0.0
          %1008 = vadd.xlane.f32.xlu0 %v1007
          %v1009 = vpop.xlane.xlu0 %1008
          %v1010 = vsel %vm901, %v975, 0.0
          %1011 = vadd.xlane.f32.xlu0 %v1010
          %v1012 = vpop.xlane.xlu0 %1011
          %v1013 = vsel %vm901, %v977, 0.0
          %1014 = vadd.xlane.f32.xlu0 %v1013
          %v1015 = vpop.xlane.xlu0 %1014
          %v1016 = vsel %vm901, %v979, 0.0
          %1017 = vadd.xlane.f32.xlu0 %v1016
          %v1018 = vpop.xlane.xlu0 %1017
          %v1019 = vsel %vm901, %v981, 0.0
          %1020 = vadd.xlane.f32.xlu0 %v1019
          %v1021 = vpop.xlane.xlu0 %1020
          %v1022 = vsel %vm901, %v983, 0.0
          %1023 = vadd.xlane.f32.xlu0 %v1022
          %v1024 = vpop.xlane.xlu0 %1023
          %v1025 = vsel %vm901, %v985, 0.0
          %1026 = vadd.xlane.f32.xlu0 %v1025
          %v1027 = vpop.xlane.xlu0 %1026
          %v1028 = vsel %vm901, %v987, 0.0
          %1029 = vadd.xlane.f32.xlu0 %v1028
          %v1030 = vpop.xlane.xlu0 %1029
          %v1031 = vsel %vm901, %v989, 0.0
          %1032 = vadd.xlane.f32.xlu0 %v1031
          %v1033 = vpop.xlane.xlu0 %1032
          %v1034 = vsel %vm901, %v991, 0.0
          %1035 = vadd.xlane.f32.xlu0 %v1034
          %v1036 = vpop.xlane.xlu0 %1035
          %v1037 = vsel %vm901, %v993, 0.0
          %1038 = vadd.xlane.f32.xlu0 %v1037
          %v1039 = vpop.xlane.xlu0 %1038
          %v1040 = vsel %vm901, %v995, 0.0
          %1041 = vadd.xlane.f32.xlu0 %v1040
          %v1042 = vpop.xlane.xlu0 %1041
          %v1043 = vsel %vm901, %v997, 0.0
          %1044 = vadd.xlane.f32.xlu0 %v1043
          %v1045 = vpop.xlane.xlu0 %1044
          %v1046 = vrcp.pop %v1000
          %v1047 = vrcp.pop %v1003
          %v1048 = vrcp.pop %v1006
          %v1049 = vrcp.pop %v1009
          %v1050 = vrcp.pop %v1012
          %v1051 = vrcp.pop %v1015
          %v1052 = vrcp.pop %v1018
          %v1053 = vrcp.pop %v1021
          %v1054 = vrcp.pop %v1024
          %v1055 = vrcp.pop %v1027
          %v1056 = vrcp.pop %v1030
          %v1057 = vrcp.pop %v1033
          %v1058 = vrcp.pop %v1036
          %v1059 = vrcp.pop %v1039
          %v1060 = vrcp.pop %v1042
          %v1061 = vrcp.pop %v1045
          %v1062 = vmul.f32 %v967, %v1046
          %v1063 = vmul.f32 %v969, %v1047
          %v1064 = vmul.f32 %v971, %v1048
          %v1065 = vmul.f32 %v973, %v1049
          %v1066 = vmul.f32 %v975, %v1050
          %v1067 = vmul.f32 %v977, %v1051
          %v1068 = vmul.f32 %v979, %v1052
          %v1069 = vmul.f32 %v981, %v1053
          %v1070 = vmul.f32 %v983, %v1054
          %v1071 = vmul.f32 %v985, %v1055
          %v1072 = vmul.f32 %v987, %v1056
          %v1073 = vmul.f32 %v989, %v1057
          %v1074 = vmul.f32 %v991, %v1058
          %v1075 = vmul.f32 %v993, %v1059
          %v1076 = vmul.f32 %v995, %v1060
          %v1077 = vmul.f32 %v997, %v1061
          %v1079 = vsel %vm901, %v900, 0
          %v1082 = vsel %vm901, %v1062, 0
          %v1085 = vsel %vm901, %v1063, 0
          %v1088 = vsel %vm901, %v1064, 0
          %v1091 = vsel %vm901, %v1065, 0
          %v1094 = vsel %vm901, %v1066, 0
          %v1097 = vsel %vm901, %v1067, 0
          %v1100 = vsel %vm901, %v1068, 0
          %v1103 = vsel %vm901, %v1069, 0
          %v1106 = vsel %vm901, %v1070, 0
          %v1109 = vsel %vm901, %v1071, 0
          %v1112 = vsel %vm901, %v1072, 0
          %v1115 = vsel %vm901, %v1073, 0
          %v1118 = vsel %vm901, %v1074, 0
          %v1121 = vsel %vm901, %v1075, 0
          %v1124 = vsel %vm901, %v1076, 0
          %v1127 = vsel %vm901, %v1077, 0
          %1129 = vmatprep.subr.mxu0 0.0
          %1130 = vmatpush1.xpose.msra.mxu0 %v1082
          %1131 = vmatprep.subr.mxu0 0.0
          %1132 = vmatpush1.xpose.msra.mxu0 %v1085
          %1133 = vmatprep.subr.mxu0 0.0
          %1134 = vmatpush1.xpose.msra.mxu0 %v1088
          %1135 = vmatprep.subr.mxu0 0.0
          %1136 = vmatpush1.xpose.msra.mxu0 %v1091
          %1137 = vmatprep.subr.mxu0 0.0
          %1138 = vmatpush1.xpose.msra.mxu0 %v1094
          %1139 = vmatprep.subr.mxu0 0.0
          %1140 = vmatpush1.xpose.msra.mxu0 %v1097
          %1141 = vmatprep.subr.mxu0 0.0
          %1142 = vmatpush1.xpose.msra.mxu0 %v1100
          %1143 = vmatprep.subr.mxu0 0.0
          %1144 = vmatpush1.xpose.msra.mxu0 %v1103
          %1145 = vmatprep.subr.mxu0 0.0
          %1146 = vmatpush1.xpose.msra.mxu0 %v1106
          %1147 = vmatprep.subr.mxu0 0.0
          %1148 = vmatpush1.xpose.msra.mxu0 %v1109
          %1149 = vmatprep.subr.mxu0 0.0
          %1150 = vmatpush1.xpose.msra.mxu0 %v1112
          %1151 = vmatprep.subr.mxu0 0.0
          %1152 = vmatpush1.xpose.msra.mxu0 %v1115
          %1153 = vmatprep.subr.mxu0 0.0
          %1154 = vmatpush1.xpose.msra.mxu0 %v1118
          %1155 = vmatprep.subr.mxu0 0.0
          %1156 = vmatpush1.xpose.msra.mxu0 %v1121
          %1157 = vmatprep.subr.mxu0 0.0
          %1158 = vmatpush1.xpose.msra.mxu0 %v1124
          %1159 = vmatprep.subr.mxu0 0.0
          %1160 = vmatpush1.xpose.msra.mxu0 %v1127
          %1161 = vmatprep.subr.mxu0 0.0
          %1162 = vmatpush1.xpose.msra.mxu0 0.0
          %1163 = vmatprep.subr.mxu0 0.0
          %1164 = vmatpush1.xpose.msra.mxu0 0.0
          %1165 = vmatprep.subr.mxu0 0.0
          %1166 = vmatpush1.xpose.msra.mxu0 0.0
          %1167 = vmatprep.subr.mxu0 0.0
          %1168 = vmatpush1.xpose.msra.mxu0 0.0
          %1169 = vmatprep.subr.mxu0 0.0
          %1170 = vmatpush1.xpose.msra.mxu0 0.0
          %1171 = vmatprep.subr.mxu0 0.0
          %1172 = vmatpush1.xpose.msra.mxu0 0.0
          %1173 = vmatprep.subr.mxu0 0.0
          %1174 = vmatpush1.xpose.msra.mxu0 0.0
          %1175 = vmatprep.subr.mxu0 0.0
          %1176 = vmatpush1.xpose.msra.mxu0 0.0
          %1177 = vmatprep.subr.mxu0 0.0
          %1178 = vmatpush1.xpose.msra.mxu0 0.0
          %1179 = vmatprep.subr.mxu0 0.0
          %1180 = vmatpush1.xpose.msra.mxu0 0.0
          %1181 = vmatprep.subr.mxu0 0.0
          %1182 = vmatpush1.xpose.msra.mxu0 0.0
          %1183 = vmatprep.subr.mxu0 0.0
          %1184 = vmatpush1.xpose.msra.mxu0 0.0
          %1185 = vmatprep.subr.mxu0 0.0
          %1186 = vmatpush1.xpose.msra.mxu0 0.0
          %1187 = vmatprep.subr.mxu0 0.0
          %1188 = vmatpush1.xpose.msra.mxu0 0.0
          %1189 = vmatprep.subr.mxu0 0.0
          %1190 = vmatpush1.xpose.msra.mxu0 0.0
          %1191 = vmatprep.subr.mxu0 0.0
          %1192 = vmatpush1.xpose.msra.mxu0 0.0
          %1193 = vmatprep.mubr.f32.mxu0 0.0
          %1194 = vmatmul.mubr.f32.gmra.mrb[0].mxu0 %v1079
          %v1195 = vpop.f32.mrb[0].mxu0
          %v1196 = vadd.f32 0.0, %v1195
          %v1197 = vpop.f32.mrb[0].mxu0
          %1198 = vdwg.mxu0
          %v1199 = vsub.f32 0.0, %v1196
          %v1200 = vadd.f32 %v861, %v1199
          %v1201 = vadd.f32 %v1200, %v882
          %1202 = vst [vmem:[%s264] sm:$0xf] %v1201
          %s1203 = scalar_lea.vmem %s264, 4 [#allocation7]
          %1204 = vst [vmem:[%s1203] sm:$0xf] %v883
        $region44: #{_matcher_device_fn.3} parent=35 // pred_fallthru
          _
        %s1205 = sand.u32 %s146, 1
        %s1206 = scalar_lea.sflag [#allocation8], %s1205
        %s1207 = sand.u32 %s146, 1
        %s1208 = smul.addr %s1207, 8
        %s1209 = scalar_lea.vmem [#allocation7], %s1208
        // Predicated region
        $region45: #{_matcher_device_fn.3} parent=35 // pred_check
          %p1210 = pneg %p156
        $region46: #{_matcher_device_fn.3} parent=35 // pred_check_branch
          %1212 = sbr.rel (%p1210) target = $region48
        $region47: #{_matcher_device_fn.3} parent=35 // pred_region
          %s1214 = ssub.s32 128, 128
          %1215 = vsyncadd %s1206, %s1214
          %s1216 = smul.addr %s22, 2
          %s1217 = smul.addr %s1216, 64
          %s1218 = scalar_lea.hbm %s4, %s1217
          %s1219 = sshll.u32 %s1209, 4
          %s1220 = int_to_ptr.vmem [resolvable:$true] %s1219
          %1225 = dma.vmem_to_hbm [thread:$0]  %s1220, 128, %s1218, %s1206, 64, 64, 4
        $region48: #{_matcher_device_fn.3} parent=35 // pred_fallthru
          _
      $region36: #{_matcher_device_fn.3} parent=5 // pred_fallthru
        _
      %p1226 = scmp.le.s32.totalorder 2, %s13
      // Predicated region
      $region49: #{_matcher_device_fn.3} parent=5 // pred_check
        %p1227 = pneg %p1226
      $region50: #{_matcher_device_fn.3} parent=5 // pred_check_branch
        %1229 = sbr.rel (%p1227) target = $region52
      $region51: #{_matcher_device_fn.3} parent=5 // pred_region
        %s1230 = ssub.s32 %s13, 2
        // Predicated region
        $region53: #{_matcher_device_fn.3} parent=51 // pred_check
          %p1231 = pneg %p162
        $region54: #{_matcher_device_fn.3} parent=51 // pred_check_branch
          %1233 = sbr.rel (%p1231) target = $region56
        $region55: #{_matcher_device_fn.3} parent=51 // pred_region
          %s1234 = sand.u32 %s147, 1
          %s1235 = scalar_lea.sflag [#allocation8], %s1234
          %s1236 = sand.u32 %s147, 1
          %s1237 = smul.addr %s1236, 8
          %s1238 = scalar_lea.vmem [#allocation7], %s1237
          %1239 = dma.done %s1235, 128
        $region56: #{_matcher_device_fn.3} parent=51 // pred_fallthru
          _
      $region52: #{_matcher_device_fn.3} parent=5 // pred_fallthru
        _
    $region6: #{_matcher_device_fn.3} parent=1 // loop_footer
      %s17 = sadd.s32 1, %s13
    $region7: #{_matcher_device_fn.3} parent=1 // loop_footer_branch
      %12 = sbr.rel target = $region3
    $region8: #{_matcher_device_fn.3} parent=1 // loop_exit
      _
    %1240 = vsyncpa [#allocation8], 1
    %s1241 = scalar_lea.sflag [#allocation8], 1
    %1242 = vsyncpa %s1241, 1

</llo_original>
